<compile_context>
chip_gen: v6e
topology: v6e:2x2x1
jax: 0.10.0
libtpu: 0.0.40
codegen_flags: <defaults>
</compile_context>

<pallas_src>
import functools

import jax
import jax.numpy as jnp
import numpy as np
from jax.experimental import pallas as pl
from jax.experimental.pallas import tpu as pltpu


def _round_up(x, m):
    return ((x + m - 1) // m) * m


# ---------------------------------------------------------------------------
# Kernel
# ---------------------------------------------------------------------------
def ensemble_model_kernel(x_ref, w1_ref, w2_ref, w3_ref, w4_ref, w5_ref,
                          bh_ref, c_ref, mean_ref, lv_ref, *, ret_log_var: bool):
    def dot(a, w_ref):
        w = w_ref[...]
        if w.dtype == jnp.bfloat16:          # bf16 MXU inputs, f32 accumulate
            a = a.astype(jnp.bfloat16)
        return jnp.dot(a, w, preferred_element_type=jnp.float32)

    def swish(v):
        # x*sigmoid(x) == 0.5*x*(1+tanh(x/2)): one EUP transcendental / elem.
        return 0.5 * v * (jnp.tanh(0.5 * v) + 1.0)

    x = x_ref[...]
    h = swish(dot(x, w1_ref) + bh_ref[0:1, :])
    h = swish(dot(h, w2_ref) + bh_ref[1:2, :])
    h = swish(dot(h, w3_ref) + bh_ref[2:3, :])
    h = swish(dot(h, w4_ref) + bh_ref[3:4, :])

    out5 = dot(h, w5_ref)                    # (TB, 2*KO_half): [mean | logvar]
    ko_half = mean_ref.shape[-1]

    # Mean half: just add its bias lanes, store untouched.
    mean_ref[...] = out5[:, :ko_half] + c_ref[0:1, :]

    # Logvar half only: softplus clamp (+ optional exp).  Padded lanes have
    # max/min logvar == 0 there, so nothing can overflow.
    lv = out5[:, ko_half:] + c_ref[1:2, :]
    max_lv = c_ref[2:3, :]
    min_lv = c_ref[3:4, :]
    lv = max_lv - jax.nn.softplus(max_lv - lv)
    lv = min_lv + jax.nn.softplus(lv - min_lv)
    if not ret_log_var:
        lv = jnp.exp(lv)
    lv_ref[...] = lv


# ---------------------------------------------------------------------------
# Parameter packing (call once per parameter update, reuse across steps)
# ---------------------------------------------------------------------------
def pack_params(params, use_bf16_matmul: bool = False):
    """Build fused block-diagonal weight slabs (numpy, one-time cost)."""
    p = {k: np.asarray(params[k], np.float32) for k in
         ("w1", "w2", "w3", "w4", "w5", "b1", "b2", "b3", "b4", "b5",
          "max_logvar", "min_logvar")}
    E, Din, H = p["w1"].shape
    O = p["max_logvar"].shape[-1]

    K1 = _round_up(E * Din, 128)
    KH = _round_up(E * H, 128)
    KO_half = _round_up(E * O, 128)          # mean half == logvar half width
    wdtype = jnp.bfloat16 if use_bf16_matmul else jnp.float32

    def block_diag(w, rows_pad, cols_pad):
        e_, din, dout = w.shape
        slab = np.zeros((rows_pad, cols_pad), np.float32)
        for e in range(e_):
            slab[e * din:(e + 1) * din, e * dout:(e + 1) * dout] = w[e]
        return jnp.asarray(slab, wdtype)

    # W5 with permuted output columns: mean lanes -> [e*O:(e+1)*O] of the
    # first half, logvar lanes -> same offsets in the second half.
    w5 = np.zeros((KH, 2 * KO_half), np.float32)
    for e in range(E):
        w5[e * H:(e + 1) * H, e * O:(e + 1) * O] = p["w5"][e, :, :O]
        w5[e * H:(e + 1) * H, KO_half + e * O:KO_half + (e + 1) * O] = p["w5"][e, :, O:]

    # b1..b4 concatenated per-ensemble into one (4, KH) slab.
    bh = np.zeros((4, KH), np.float32)
    for row, name in enumerate(("b1", "b2", "b3", "b4")):
        bh[row, :E * H] = p[name].reshape(-1)

    # (4, KO_half): rows = [b5_mean, b5_logvar, max_logvar, min_logvar].
    lvc = np.zeros((4, KO_half), np.float32)
    for e in range(E):
        lvc[0, e * O:(e + 1) * O] = p["b5"][e, :O]
        lvc[1, e * O:(e + 1) * O] = p["b5"][e, O:]
        lvc[2, e * O:(e + 1) * O] = p["max_logvar"][0]
        lvc[3, e * O:(e + 1) * O] = p["min_logvar"][0]

    slabs = {
        "w1": block_diag(p["w1"], K1, KH),
        "w2": block_diag(p["w2"], KH, KH),
        "w3": block_diag(p["w3"], KH, KH),
        "w4": block_diag(p["w4"], KH, KH),
        "w5": jnp.asarray(w5, wdtype),
        "bh": jnp.asarray(bh),
        "lvc": jnp.asarray(lvc),
    }
    meta = {"output_dim": int(O)}
    return slabs, meta


# ---------------------------------------------------------------------------
# Per-chip knobs
# ---------------------------------------------------------------------------
@functools.lru_cache(maxsize=1)
def _single_tile_cap():
    # v7x: 2 TensorCores/chip -> keep >=2 parallel batch tiles for large B.
    # v5e/v6e: no real megacore benefit -> fewer, larger tiles.
    try:
        kind = jax.devices()[0].device_kind.lower()
    except Exception:
        return 1024
    return 512 if "v7" in kind else 1024


_BUFFERED1_OK = None


def _buffered_one_supported():
    """Probe once whether pl.Buffered(1) single-buffering of grid-invariant
    blocks is supported & correct on this jax/libtpu; else fall back."""
    global _BUFFERED1_OK
    if _BUFFERED1_OK is not None:
        return _BUFFERED1_OK

    def probe(c_ref, x_ref, o_ref):
        o_ref[...] = x_ref[...] + c_ref[...]

    try:
        c = jnp.full((8, 128), 3.0, jnp.float32)
        x = jnp.arange(16 * 128, dtype=jnp.float32).reshape(16, 128)
        out = pl.pallas_call(
            probe,
            out_shape=jax.ShapeDtypeStruct((16, 128), jnp.float32),
            grid=(2,),
            in_specs=[
                pl.BlockSpec((8, 128), lambda i: (0, 0),
                             pipeline_mode=pl.Buffered(1)),
                pl.BlockSpec((8, 128), lambda i: (i, 0)),
            ],
            out_specs=pl.BlockSpec((8, 128), lambda i: (i, 0)),
        )(c, x)
        _BUFFERED1_OK = bool(np.allclose(np.asarray(out), np.asarray(x) + 3.0))
    except Exception:
        _BUFFERED1_OK = False
    return _BUFFERED1_OK


# ---------------------------------------------------------------------------
# Forward
# ---------------------------------------------------------------------------
@functools.partial(jax.jit, static_argnames=("output_dim", "ret_log_var",
                                             "buffered_resident", "batch_cap"))
def _forward_impl(x, slabs, *, output_dim, ret_log_var, buffered_resident,
                  batch_cap):
    E, B, Din = x.shape
    O = output_dim
    w1, w2, w3, w4, w5 = (slabs[k] for k in ("w1", "w2", "w3", "w4", "w5"))
    bh, lvc = slabs["bh"], slabs["lvc"]
    K1, KH = w1.shape
    KO_half = lvc.shape[1]

    # --- batch tiling ------------------------------------------------------
    B8 = _round_up(max(B, 8), 8)
    if B8 <= batch_cap:
        TB = B8
    elif batch_cap > 512 and B8 % 1024 == 0:
        TB = 1024                      # v5e/v6e: amortize per-step overhead
    else:
        TB = 512                       # v7x: keep both TCs fed
    B_pad = _round_up(B8, TB)
    nb = B_pad // TB

    # --- input layout: (E, B, Din) -> (B_pad, K1) ---------------------------
    x_slab = jnp.zeros((B_pad, K1), jnp.float32)
    x_slab = x_slab.at[:B, :E * Din].set(
        jnp.transpose(x, (1, 0, 2)).reshape(B, E * Din).astype(jnp.float32))

    # --- specs --------------------------------------------------------------
    res_kwargs = {"pipeline_mode": pl.Buffered(1)} if buffered_resident else {}

    def resident(arr):   # weights / consts: full block, resident across tiles
        return pl.BlockSpec(arr.shape, lambda i: (0, 0), **res_kwargs)

    in_specs = [
        pl.BlockSpec((TB, K1), lambda i: (i, 0)),       # streamed x tile
        resident(w1), resident(w2), resident(w3), resident(w4), resident(w5),
        resident(bh), resident(lvc),
    ]
    out_specs = [
        pl.BlockSpec((TB, KO_half), lambda i: (i, 0)),  # mean half
        pl.BlockSpec((TB, KO_half), lambda i: (i, 0)),  # (log)var half
    ]
    out_shape = (jax.ShapeDtypeStruct((B_pad, KO_half), jnp.float32),
                 jax.ShapeDtypeStruct((B_pad, KO_half), jnp.float32))

    kernel = functools.partial(ensemble_model_kernel, ret_log_var=ret_log_var)

    mean_slab, lv_slab = pl.pallas_call(
        kernel,
        out_shape=out_shape,
        grid_spec=pltpu.PrefetchScalarGridSpec(
            num_scalar_prefetch=0,
            grid=(nb,),
            in_specs=in_specs,
            out_specs=out_specs,
        ),
        compiler_params=pltpu.CompilerParams(
            dimension_semantics=("parallel",),
        ),
    )(x_slab, w1, w2, w3, w4, w5, bh, lvc)

    # Un-fuse: (B_pad, KO_half) -> (E, B, O)
    mean = mean_slab[:B, :E * O].reshape(B, E, O).transpose(1, 0, 2)
    var = lv_slab[:B, :E * O].reshape(B, E, O).transpose(1, 0, 2)
    return mean, var


def ensemble_model_forward(x, packed, ret_log_var: bool = False):
    """x: (E, B, state+action). packed = pack_params(params).
    Returns (mean, var) or (mean, logvar), each (E, B, output_dim)."""
    slabs, meta = packed
    return _forward_impl(
        x, slabs,
        output_dim=meta["output_dim"],
        ret_log_var=bool(ret_log_var),
        buffered_resident=_buffered_one_supported(),
        batch_cap=_single_tile_cap(),
    )


# ---------------------------------------------------------------------------
# Init + pure-JAX reference (mirrors the PyTorch module)
# ---------------------------------------------------------------------------
def init_params(key, state_size, action_size, reward_size, ensemble_size,
                hidden_size):
    """Truncated-normal init matching init_weights (std = 1/(2*sqrt(in)))."""
    O = state_size + reward_size
    dims = [
        (state_size + action_size, hidden_size),
        (hidden_size, hidden_size),
        (hidden_size, hidden_size),
        (hidden_size, hidden_size),
        (hidden_size, 2 * O),
    ]
    params = {}
    keys = jax.random.split(key, len(dims))
    for i, ((din, dout), k) in enumerate(zip(dims, keys), start=1):
        std = 1.0 / (2.0 * np.sqrt(din))
        w = jax.random.truncated_normal(
            k, -2.0, 2.0, (ensemble_size, din, dout), jnp.float32) * std
        params[f"w{i}"] = w
        params[f"b{i}"] = jnp.zeros((ensemble_size, dout), jnp.float32)
    params["max_logvar"] = jnp.ones((1, O), jnp.float32) * 0.5
    params["min_logvar"] = -jnp.ones((1, O), jnp.float32) * 10.0
    return params


def reference_forward(x, params, ret_log_var=False):
    """Pure-JAX reference of EnsembleModel.forward."""
    O = params["max_logvar"].shape[-1]

    def fc(h, w, b):
        return jnp.einsum("ebi,eio->ebo", h, w) + b[:, None, :]

    def swish(v):
        return v * jax.nn.sigmoid(v)

    h = swish(fc(x, params["w1"], params["b1"]))
    h = swish(fc(h, params["w2"], params["b2"]))
    h = swish(fc(h, params["w3"], params["b3"]))
    h = swish(fc(h, params["w4"], params["b4"]))
    out = fc(h, params["w5"], params["b5"])
    mean = out[:, :, :O]
    logvar = out[:, :, O:]
    logvar = params["max_logvar"] - jax.nn.softplus(params["max_logvar"] - logvar)
    logvar = params["min_logvar"] + jax.nn.softplus(logvar - params["min_logvar"])
    return (mean, logvar) if ret_log_var else (mean, jnp.exp(logvar))


if __name__ == "__main__":
    state_size, action_size, reward_size = 11, 3, 1
    ensemble_size, hidden_size, batch = 7, 32, 8

    key = jax.random.PRNGKey(0)
    kp, kx = jax.random.split(key)
    params = init_params(kp, state_size, action_size, reward_size,
                         ensemble_size, hidden_size)
    x = jax.random.normal(
        kx, (ensemble_size, batch, state_size + action_size), jnp.float32)

    packed = pack_params(params)          # build slabs ONCE, reuse every step

    # Tolerance 1e-3 covers TPU default matmul precision + the (exact)
    # tanh-form swish vs. the reference's sigmoid-form swish.
    mean, var = ensemble_model_forward(x, packed, ret_log_var=False)
    jax.block_until_ready((mean, var))
    mean_ref, var_ref = reference_forward(x, params, ret_log_var=False)
    np.testing.assert_allclose(np.asarray(mean), np.asarray(mean_ref), rtol=1e-3, atol=1e-3)
    np.testing.assert_allclose(np.asarray(var), np.asarray(var_ref), rtol=1e-3, atol=1e-3)

    mean2, logvar2 = ensemble_model_forward(x, packed, ret_log_var=True)
    jax.block_until_ready((mean2, logvar2))
    mean_ref2, logvar_ref2 = reference_forward(x, params, ret_log_var=True)
    np.testing.assert_allclose(np.asarray(mean2), np.asarray(mean_ref2), rtol=1e-3, atol=1e-3)
    np.testing.assert_allclose(np.asarray(logvar2), np.asarray(logvar_ref2), rtol=1e-3, atol=1e-3)

    # bf16 matmul-input fast path (v6e/v7x); elementwise math stays f32.
    packed_bf16 = pack_params(params, use_bf16_matmul=True)
    mean3, var3 = ensemble_model_forward(x, packed_bf16, ret_log_var=False)
    jax.block_until_ready((mean3, var3))
    np.testing.assert_allclose(np.asarray(mean3), np.asarray(mean_ref), rtol=1e-1, atol=2e-2)
    np.testing.assert_allclose(np.asarray(var3), np.asarray(var_ref), rtol=1e-1, atol=2e-2)

    print("KERNEL_OK")
</pallas_src>

<mosaic_0001>
module attributes {stable_mosaic.version = 11 : i64} {
  func.func @probe(%arg0: i32, %arg1: memref<8x128xf32, #tpu.memory_space<vmem>>, %arg2: memref<8x128xf32, #tpu.memory_space<vmem>>, %arg3: memref<8x128xf32, #tpu.memory_space<vmem>>) attributes {dimension_semantics = [#tpu.dimension_semantics<arbitrary>], iteration_bounds = array<i64: 2>, scalar_prefetch = 0 : i64, scratch_operands = 0 : i64, tpu.core_type = #tpu.core_type<tc>, window_params = [{pipeline_mode = #tpu.pipeline_mode<synchronous>, transform_indices = @transform_0, window_bounds = array<i64: 8, 128>}, {transform_indices = @transform_1, window_bounds = array<i64: 8, 128>}, {transform_indices = @transform_2, window_bounds = array<i64: 8, 128>}]} {
    %c0 = arith.constant 0 : index
    %c0_0 = arith.constant 0 : index
    %0 = vector.load %arg2[%c0, %c0_0] : memref<8x128xf32, #tpu.memory_space<vmem>>, vector<8x128xf32>
    %c0_1 = arith.constant 0 : index
    %c0_2 = arith.constant 0 : index
    %1 = vector.load %arg1[%c0_1, %c0_2] : memref<8x128xf32, #tpu.memory_space<vmem>>, vector<8x128xf32>
    %2 = arith.addf %0, %1 : vector<8x128xf32>
    %c0_3 = arith.constant 0 : index
    %c0_4 = arith.constant 0 : index
    %3 = vector.load %arg3[%c0_3, %c0_4] : memref<8x128xf32, #tpu.memory_space<vmem>>, vector<8x128xf32>
    tpu.vector_store %arg3[%c0_3, %c0_4], %2 {strides = array<i32>} : memref<8x128xf32, #tpu.memory_space<vmem>>, vector<8x128xf32>,
    return
  }
  func.func @transform_0(%arg0: i32) -> (i32, i32) {
    %c0_i32 = arith.constant 0 : i32
    %c0_i32_0 = arith.constant 0 : i32
    %c0_i32_1 = arith.constant 0 : i32
    return %c0_i32, %c0_i32_0 : i32, i32
  }
  func.func @transform_1(%arg0: i32) -> (i32, i32) {
    %c0_i32 = arith.constant 0 : i32
    %c0_i32_0 = arith.constant 0 : i32
    return %arg0, %c0_i32 : i32, i32
  }
  func.func @transform_2(%arg0: i32) -> (i32, i32) {
    %c0_i32 = arith.constant 0 : i32
    %c0_i32_0 = arith.constant 0 : i32
    return %arg0, %c0_i32 : i32, i32
  }
}

module attributes {stable_mosaic.version = 11 : i64} {
  func.func @ensemble_model_kernel(%arg0: i32, %arg1: memref<8x128xf32, #tpu.memory_space<vmem>>, %arg2: memref<128x256xf32, #tpu.memory_space<vmem>>, %arg3: memref<256x256xf32, #tpu.memory_space<vmem>>, %arg4: memref<256x256xf32, #tpu.memory_space<vmem>>, %arg5: memref<256x256xf32, #tpu.memory_space<vmem>>, %arg6: memref<256x256xf32, #tpu.memory_space<vmem>>, %arg7: memref<4x256xf32, #tpu.memory_space<vmem>>, %arg8: memref<4x128xf32, #tpu.memory_space<vmem>>, %arg9: memref<8x128xf32, #tpu.memory_space<vmem>>, %arg10: memref<8x128xf32, #tpu.memory_space<vmem>>) attributes {dimension_semantics = [#tpu.dimension_semantics<parallel>], iteration_bounds = array<i64: 1>, scalar_prefetch = 0 : i64, scratch_operands = 0 : i64, tpu.core_type = #tpu.core_type<tc>, window_params = [{transform_indices = @transform_0, window_bounds = array<i64: 8, 128>}, {pipeline_mode = #tpu.pipeline_mode<synchronous>, transform_indices = @transform_1, window_bounds = array<i64: 128, 256>}, {pipeline_mode = #tpu.pipeline_mode<synchronous>, transform_indices = @transform_2, window_bounds = array<i64: 256, 256>}, {pipeline_mode = #tpu.pipeline_mode<synchronous>, transform_indices = @transform_3, window_bounds = array<i64: 256, 256>}, {pipeline_mode = #tpu.pipeline_mode<synchronous>, transform_indices = @transform_4, window_bounds = array<i64: 256, 256>}, {pipeline_mode = #tpu.pipeline_mode<synchronous>, transform_indices = @transform_5, window_bounds = array<i64: 256, 256>}, {pipeline_mode = #tpu.pipeline_mode<synchronous>, transform_indices = @transform_6, window_bounds = array<i64: 4, 256>}, {pipeline_mode = #tpu.pipeline_mode<synchronous>, transform_indices = @transform_7, window_bounds = array<i64: 4, 128>}, {transform_indices = @transform_8, window_bounds = array<i64: 8, 128>}, {transform_indices = @transform_9, window_bounds = array<i64: 8, 128>}]} {
    %c0 = arith.constant 0 : index
    %c0_0 = arith.constant 0 : index
    %0 = vector.load %arg1[%c0, %c0_0] : memref<8x128xf32, #tpu.memory_space<vmem>>, vector<8x128xf32>
    %c0_1 = arith.constant 0 : index
    %c0_2 = arith.constant 0 : index
    %1 = vector.load %arg2[%c0_1, %c0_2] : memref<128x256xf32, #tpu.memory_space<vmem>>, vector<128x256xf32>
    %cst = arith.constant dense<0.000000e+00> : vector<8x256xf32>
    %2 = tpu.matmul %0, %1, %cst {dimension_numbers = #tpu.dot_dimension_numbers<[1], [0], [0], [1], [0, 0, 1, 1], [], []>} : vector<8x128xf32>, vector<128x256xf32>, vector<8x256xf32> -> vector<8x256xf32>
    %c0_3 = arith.constant 0 : index
    %c0_4 = arith.constant 0 : index
    %3 = vector.load %arg7[%c0_3, %c0_4] : memref<4x256xf32, #tpu.memory_space<vmem>>, vector<1x256xf32>
    %4 = vector.broadcast %3 : vector<1x256xf32> to vector<8x256xf32>
    %5 = arith.addf %2, %4 : vector<8x256xf32>
    %cst_5 = arith.constant 5.000000e-01 : f32
    %6 = vector.broadcast %cst_5 : f32 to vector<8x256xf32>
    %7 = arith.mulf %6, %5 : vector<8x256xf32>
    %cst_6 = arith.constant 5.000000e-01 : f32
    %8 = vector.broadcast %cst_6 : f32 to vector<8x256xf32>
    %9 = arith.mulf %8, %5 : vector<8x256xf32>
    %10 = math.tanh %9 : vector<8x256xf32>
    %cst_7 = arith.constant 1.000000e+00 : f32
    %11 = vector.broadcast %cst_7 : f32 to vector<8x256xf32>
    %12 = arith.addf %10, %11 : vector<8x256xf32>
    %13 = arith.mulf %7, %12 : vector<8x256xf32>
    %c0_8 = arith.constant 0 : index
    %c0_9 = arith.constant 0 : index
    %14 = vector.load %arg3[%c0_8, %c0_9] : memref<256x256xf32, #tpu.memory_space<vmem>>, vector<256x256xf32>
    %cst_10 = arith.constant dense<0.000000e+00> : vector<8x256xf32>
    %15 = tpu.matmul %13, %14, %cst_10 {dimension_numbers = #tpu.dot_dimension_numbers<[1], [0], [0], [1], [0, 0, 1, 1], [], []>} : vector<8x256xf32>, vector<256x256xf32>, vector<8x256xf32> -> vector<8x256xf32>
    %c1 = arith.constant 1 : index
    %c0_11 = arith.constant 0 : index
    %16 = vector.load %arg7[%c1, %c0_11] : memref<4x256xf32, #tpu.memory_space<vmem>>, vector<1x256xf32>
    %17 = vector.broadcast %16 : vector<1x256xf32> to vector<8x256xf32>
    %18 = arith.addf %15, %17 : vector<8x256xf32>
    %cst_12 = arith.constant 5.000000e-01 : f32
    %19 = vector.broadcast %cst_12 : f32 to vector<8x256xf32>
    %20 = arith.mulf %19, %18 : vector<8x256xf32>
    %cst_13 = arith.constant 5.000000e-01 : f32
    %21 = vector.broadcast %cst_13 : f32 to vector<8x256xf32>
    %22 = arith.mulf %21, %18 : vector<8x256xf32>
    %23 = math.tanh %22 : vector<8x256xf32>
    %cst_14 = arith.constant 1.000000e+00 : f32
    %24 = vector.broadcast %cst_14 : f32 to vector<8x256xf32>
    %25 = arith.addf %23, %24 : vector<8x256xf32>
    %26 = arith.mulf %20, %25 : vector<8x256xf32>
    %c0_15 = arith.constant 0 : index
    %c0_16 = arith.constant 0 : index
    %27 = vector.load %arg4[%c0_15, %c0_16] : memref<256x256xf32, #tpu.memory_space<vmem>>, vector<256x256xf32>
    %cst_17 = arith.constant dense<0.000000e+00> : vector<8x256xf32>
    %28 = tpu.matmul %26, %27, %cst_17 {dimension_numbers = #tpu.dot_dimension_numbers<[1], [0], [0], [1], [0, 0, 1, 1], [], []>} : vector<8x256xf32>, vector<256x256xf32>, vector<8x256xf32> -> vector<8x256xf32>
    %c2 = arith.constant 2 : index
    %c0_18 = arith.constant 0 : index
    %29 = vector.load %arg7[%c2, %c0_18] : memref<4x256xf32, #tpu.memory_space<vmem>>, vector<1x256xf32>
    %30 = vector.broadcast %29 : vector<1x256xf32> to vector<8x256xf32>
    %31 = arith.addf %28, %30 : vector<8x256xf32>
    %cst_19 = arith.constant 5.000000e-01 : f32
    %32 = vector.broadcast %cst_19 : f32 to vector<8x256xf32>
    %33 = arith.mulf %32, %31 : vector<8x256xf32>
    %cst_20 = arith.constant 5.000000e-01 : f32
    %34 = vector.broadcast %cst_20 : f32 to vector<8x256xf32>
    %35 = arith.mulf %34, %31 : vector<8x256xf32>
    %36 = math.tanh %35 : vector<8x256xf32>
    %cst_21 = arith.constant 1.000000e+00 : f32
    %37 = vector.broadcast %cst_21 : f32 to vector<8x256xf32>
    %38 = arith.addf %36, %37 : vector<8x256xf32>
    %39 = arith.mulf %33, %38 : vector<8x256xf32>
    %c0_22 = arith.constant 0 : index
    %c0_23 = arith.constant 0 : index
    %40 = vector.load %arg5[%c0_22, %c0_23] : memref<256x256xf32, #tpu.memory_space<vmem>>, vector<256x256xf32>
    %cst_24 = arith.constant dense<0.000000e+00> : vector<8x256xf32>
    %41 = tpu.matmul %39, %40, %cst_24 {dimension_numbers = #tpu.dot_dimension_numbers<[1], [0], [0], [1], [0, 0, 1, 1], [], []>} : vector<8x256xf32>, vector<256x256xf32>, vector<8x256xf32> -> vector<8x256xf32>
    %c3 = arith.constant 3 : index
    %c0_25 = arith.constant 0 : index
    %42 = vector.load %arg7[%c3, %c0_25] : memref<4x256xf32, #tpu.memory_space<vmem>>, vector<1x256xf32>
    %43 = vector.broadcast %42 : vector<1x256xf32> to vector<8x256xf32>
    %44 = arith.addf %41, %43 : vector<8x256xf32>
    %cst_26 = arith.constant 5.000000e-01 : f32
    %45 = vector.broadcast %cst_26 : f32 to vector<8x256xf32>
    %46 = arith.mulf %45, %44 : vector<8x256xf32>
    %cst_27 = arith.constant 5.000000e-01 : f32
    %47 = vector.broadcast %cst_27 : f32 to vector<8x256xf32>
    %48 = arith.mulf %47, %44 : vector<8x256xf32>
    %49 = math.tanh %48 : vector<8x256xf32>
    %cst_28 = arith.constant 1.000000e+00 : f32
    %50 = vector.broadcast %cst_28 : f32 to vector<8x256xf32>
    %51 = arith.addf %49, %50 : vector<8x256xf32>
    %52 = arith.mulf %46, %51 : vector<8x256xf32>
    %c0_29 = arith.constant 0 : index
    %c0_30 = arith.constant 0 : index
    %53 = vector.load %arg6[%c0_29, %c0_30] : memref<256x256xf32, #tpu.memory_space<vmem>>, vector<256x256xf32>
    %cst_31 = arith.constant dense<0.000000e+00> : vector<8x256xf32>
    %54 = tpu.matmul %52, %53, %cst_31 {dimension_numbers = #tpu.dot_dimension_numbers<[1], [0], [0], [1], [0, 0, 1, 1], [], []>} : vector<8x256xf32>, vector<256x256xf32>, vector<8x256xf32> -> vector<8x256xf32>
    %55 = vector.extract_strided_slice %54 {offsets = [0, 0], sizes = [8, 128], strides = [1, 1]} : vector<8x256xf32> to vector<8x128xf32>
    %c0_32 = arith.constant 0 : index
    %c0_33 = arith.constant 0 : index
    %56 = vector.load %arg8[%c0_32, %c0_33] : memref<4x128xf32, #tpu.memory_space<vmem>>, vector<1x128xf32>
    %57 = vector.broadcast %56 : vector<1x128xf32> to vector<8x128xf32>
    %58 = arith.addf %55, %57 : vector<8x128xf32>
    %c0_34 = arith.constant 0 : index
    %c0_35 = arith.constant 0 : index
    %59 = vector.load %arg9[%c0_34, %c0_35] : memref<8x128xf32, #tpu.memory_space<vmem>>, vector<8x128xf32>
    tpu.vector_store %arg9[%c0_34, %c0_35], %58 {strides = array<i32>} : memref<8x128xf32, #tpu.memory_space<vmem>>, vector<8x128xf32>,
    %60 = vector.extract_strided_slice %54 {offsets = [0, 128], sizes = [8, 128], strides = [1, 1]} : vector<8x256xf32> to vector<8x128xf32>
    %c1_36 = arith.constant 1 : index
    %c0_37 = arith.constant 0 : index
    %61 = vector.load %arg8[%c1_36, %c0_37] : memref<4x128xf32, #tpu.memory_space<vmem>>, vector<1x128xf32>
    %62 = vector.broadcast %61 : vector<1x128xf32> to vector<8x128xf32>
    %63 = arith.addf %60, %62 : vector<8x128xf32>
    %c2_38 = arith.constant 2 : index
    %c0_39 = arith.constant 0 : index
    %64 = vector.load %arg8[%c2_38, %c0_39] : memref<4x128xf32, #tpu.memory_space<vmem>>, vector<1x128xf32>
    %c3_40 = arith.constant 3 : index
    %c0_41 = arith.constant 0 : index
    %65 = vector.load %arg8[%c3_40, %c0_41] : memref<4x128xf32, #tpu.memory_space<vmem>>, vector<1x128xf32>
    %66 = vector.broadcast %64 : vector<1x128xf32> to vector<8x128xf32>
    %67 = arith.subf %66, %63 : vector<8x128xf32>
    %cst_42 = arith.constant 0.000000e+00 : f32
    %68 = vector.broadcast %cst_42 : f32 to vector<8x128xf32>
    %69 = arith.maximumf %67, %68 : vector<8x128xf32>
    %70 = vector.broadcast %cst_42 : f32 to vector<8x128xf32>
    %71 = arith.subf %67, %70 : vector<8x128xf32>
    %72 = arith.cmpf one, %71, %71 : vector<8x128xf32>
    %73 = vector.broadcast %cst_42 : f32 to vector<8x128xf32>
    %74 = arith.addf %67, %73 : vector<8x128xf32>
    %75 = math.absf %71 : vector<8x128xf32>
    %cst_43 = arith.constant 0.000000e+00 : f32
    %76 = vector.broadcast %cst_43 : f32 to vector<8x128xf32>
    %77 = arith.subf %76, %75 : vector<8x128xf32>
    %78 = math.exp %77 : vector<8x128xf32>
    %79 = math.log1p %78 : vector<8x128xf32>
    %80 = arith.addf %69, %79 : vector<8x128xf32>
    %81 = arith.select %72, %74, %80 : vector<8x128xi1>, vector<8x128xf32>
    %82 = vector.broadcast %64 : vector<1x128xf32> to vector<8x128xf32>
    %83 = arith.subf %82, %81 : vector<8x128xf32>
    %84 = vector.broadcast %65 : vector<1x128xf32> to vector<8x128xf32>
    %85 = arith.subf %83, %84 : vector<8x128xf32>
    %cst_44 = arith.constant 0.000000e+00 : f32
    %86 = vector.broadcast %cst_44 : f32 to vector<8x128xf32>
    %87 = arith.maximumf %85, %86 : vector<8x128xf32>
    %88 = vector.broadcast %cst_44 : f32 to vector<8x128xf32>
    %89 = arith.subf %85, %88 : vector<8x128xf32>
    %90 = arith.cmpf one, %89, %89 : vector<8x128xf32>
    %91 = vector.broadcast %cst_44 : f32 to vector<8x128xf32>
    %92 = arith.addf %85, %91 : vector<8x128xf32>
    %93 = math.absf %89 : vector<8x128xf32>
    %cst_45 = arith.constant 0.000000e+00 : f32
    %94 = vector.broadcast %cst_45 : f32 to vector<8x128xf32>
    %95 = arith.subf %94, %93 : vector<8x128xf32>
    %96 = math.exp %95 : vector<8x128xf32>
    %97 = math.log1p %96 : vector<8x128xf32>
    %98 = arith.addf %87, %97 : vector<8x128xf32>
    %99 = arith.select %90, %92, %98 : vector<8x128xi1>, vector<8x128xf32>
    %100 = vector.broadcast %65 : vector<1x128xf32> to vector<8x128xf32>
    %101 = arith.addf %100, %99 : vector<8x128xf32>
    %102 = math.exp %101 : vector<8x128xf32>
    %c0_46 = arith.constant 0 : index
    %c0_47 = arith.constant 0 : index
    %103 = vector.load %arg10[%c0_46, %c0_47] : memref<8x128xf32, #tpu.memory_space<vmem>>, vector<8x128xf32>
    tpu.vector_store %arg10[%c0_46, %c0_47], %102 {strides = array<i32>} : memref<8x128xf32, #tpu.memory_space<vmem>>, vector<8x128xf32>,
    return
  }
  func.func @transform_0(%arg0: i32) -> (i32, i32) {
    %c0_i32 = arith.constant 0 : i32
    %c0_i32_0 = arith.constant 0 : i32
    return %arg0, %c0_i32 : i32, i32
  }
  func.func @transform_1(%arg0: i32) -> (i32, i32) {
    %c0_i32 = arith.constant 0 : i32
    %c0_i32_0 = arith.constant 0 : i32
    %c0_i32_1 = arith.constant 0 : i32
    return %c0_i32, %c0_i32_0 : i32, i32
  }
  func.func @transform_2(%arg0: i32) -> (i32, i32) {
    %c0_i32 = arith.constant 0 : i32
    %c0_i32_0 = arith.constant 0 : i32
    %c0_i32_1 = arith.constant 0 : i32
    return %c0_i32, %c0_i32_0 : i32, i32
  }
  func.func @transform_3(%arg0: i32) -> (i32, i32) {
    %c0_i32 = arith.constant 0 : i32
    %c0_i32_0 = arith.constant 0 : i32
    %c0_i32_1 = arith.constant 0 : i32
    return %c0_i32, %c0_i32_0 : i32, i32
  }
  func.func @transform_4(%arg0: i32) -> (i32, i32) {
    %c0_i32 = arith.constant 0 : i32
    %c0_i32_0 = arith.constant 0 : i32
    %c0_i32_1 = arith.constant 0 : i32
    return %c0_i32, %c0_i32_0 : i32, i32
  }
  func.func @transform_5(%arg0: i32) -> (i32, i32) {
    %c0_i32 = arith.constant 0 : i32
    %c0_i32_0 = arith.constant 0 : i32
    %c0_i32_1 = arith.constant 0 : i32
    return %c0_i32, %c0_i32_0 : i32, i32
  }
  func.func @transform_6(%arg0: i32) -> (i32, i32) {
    %c0_i32 = arith.constant 0 : i32
    %c0_i32_0 = arith.constant 0 : i32
    %c0_i32_1 = arith.constant 0 : i32
    return %c0_i32, %c0_i32_0 : i32, i32
  }
  func.func @transform_7(%arg0: i32) -> (i32, i32) {
    %c0_i32 = arith.constant 0 : i32
    %c0_i32_0 = arith.constant 0 : i32
    %c0_i32_1 = arith.constant 0 : i32
    return %c0_i32, %c0_i32_0 : i32, i32
  }
  func.func @transform_8(%arg0: i32) -> (i32, i32) {
    %c0_i32 = arith.constant 0 : i32
    %c0_i32_0 = arith.constant 0 : i32
    return %arg0, %c0_i32 : i32, i32
  }
  func.func @transform_9(%arg0: i32) -> (i32, i32) {
    %c0_i32 = arith.constant 0 : i32
    %c0_i32_0 = arith.constant 0 : i32
    return %arg0, %c0_i32 : i32, i32
  }
}

</mosaic_0001>

<llo_original>
// kernel: tpu_custom_call.1
$region0: #{tpu_custom_call.1}
  #allocation0 [shape = 'u32[]', space=smem, size = 0x4, offset = 0x4, fixed_abs, tag = 'smem constant byte address 0x4 - core index']
  #allocation1 [shape = 'u32[144,128]{1,0:T(1,128)}', space=vmem, size = 0x12000, scoped, tag = 'internal scratch']
  %s0 = inlined_call_operand.hbm [shape: f32[8,128], index: 0, kind: input, shape index: {}]
  %s1 = inlined_call_operand.hbm [shape: f32[16,128], index: 1, kind: input, shape index: {}]
  %s2 = inlined_call_operand.hbm [shape: f32[16,128], index: 2, kind: output, shape index: {}]
  %s3 = sld [smem:[#allocation0]]
  $region49: #{tpu_custom_call.1} parent=0
    _
  %s5 = ssub.s32 1, %s3
  %s6 = scalar_select 0, %s5, %s3
  $region1: #{tpu_custom_call.1} parent=0
    #allocation2 [shape = 'u8[4096]{0}', space=vmem, size = 0x1000, scoped, tag = 'input window, operand 0, single buffered']
    #allocation3 [shape = 's32[2]{0}', space=sflag, size = 0x8, scoped, tag = 'scoped memory for tpu_custom_call.1']
    #allocation4 [shape = 's32[2]{0}', space=sflag, size = 0x8, scoped, tag = 'scoped memory for tpu_custom_call.1']
    #allocation5 [shape = 'u8[8192]{0}', space=vmem, size = 0x2000, scoped, tag = 'input window, operand 1']
    #allocation6 [shape = 's32[2]{0}', space=sflag, size = 0x8, scoped, tag = 'scoped memory for tpu_custom_call.1']
    #allocation7 [shape = 'u8[8192]{0}', space=vmem, size = 0x2000, scoped, tag = 'output window, operand 0']
    %7 = vsyncpa [#allocation3], 0
    %8 = vsyncpa [#allocation6], 0
    %s9 = scalar_lea.sflag [#allocation6], 1
    %10 = vsyncpa %s9, 0
    %11 = vsyncpa [#allocation4], 0
    %s12 = scalar_lea.sflag [#allocation4], 1
    %13 = vsyncpa %s12, 0
    loop: start=0, step=1, limit=4
    $region2: #{tpu_custom_call.1} parent=1 // loop_pre_header
      _
    $region3: #{tpu_custom_call.1} parent=1 // loop_header
      %s15 = sphi 0, %s19
      %p16 = scmp.ge.s32.totalorder %s15, 4
      %s23 = sphi 0, %s23
      %s25 = sphi 0, %s23
      %s26 = sphi 0, %s25
      %s40 = sphi 0, %s26
      %s46 = sphi 0, %s48
      %s49 = sphi 0, %s46
      %s50 = sphi 0, %s49
      %s66 = sphi 0, %s50
      %s72 = sphi 0, %s74
      %s75 = sphi 0, %s72
      %s76 = sphi 0, %s75
      %s92 = sphi 0, %s76
    $region4: #{tpu_custom_call.1} parent=1 // loop_header_branch
      %18 = sbr.rel (%p16) target = $region8
    $region5: #{tpu_custom_call.1} parent=1 // loop_body
      %s20 = ssub.s32 %s15, 1
      %s21 = ssub.s32 %s15, 2
      %s22 = sadd.s32 %s15, 1
      %s24 = sadd.s32 %s23, 1
      %p27 = scmp.eq.s32.totalorder %s15, 1
      %p28 = scmp.ne.s32.totalorder %s23, %s25
      %p29 = scmp.eq.s32.totalorder %s15, 0
      %p30 = por %p28, %p29
      %p31 = scmp.ne.s32.totalorder %s23, %s25
      %p32 = scmp.eq.s32.totalorder %s20, 1
      %p33 = por %p31, %p32
      %p34 = scmp.ne.s32.totalorder %s25, %s26
      %p35 = scmp.eq.s32.totalorder %s20, 0
      %p36 = por %p34, %p35
      %p37 = scmp.ne.s32.totalorder %s25, %s26
      %p38 = scmp.eq.s32.totalorder %s21, 1
      %p39 = por %p37, %p38
      %p41 = scmp.ne.s32.totalorder %s26, %s40
      %p42 = scmp.eq.s32.totalorder %s21, 0
      %p43 = por %p41, %p42
      %s44 = ssub.s32 %s15, %s22
      %p45 = scmp.eq.s32.totalorder %s44, 0
      %s47 = sadd.s32 %s46, 1
      %s48 = scalar_select %p45, %s46, %s47
      %p51 = pneg %p45
      %p52 = scmp.eq.s32.totalorder %s15, 1
      %p53 = por %p51, %p52
      %p54 = scmp.ne.s32.totalorder %s46, %s49
      %p55 = scmp.eq.s32.totalorder %s15, 0
      %p56 = por %p54, %p55
      %p57 = scmp.ne.s32.totalorder %s46, %s49
      %p58 = scmp.eq.s32.totalorder %s20, 1
      %p59 = por %p57, %p58
      %p60 = scmp.ne.s32.totalorder %s49, %s50
      %p61 = scmp.eq.s32.totalorder %s20, 0
      %p62 = por %p60, %p61
      %p63 = scmp.ne.s32.totalorder %s49, %s50
      %p64 = scmp.eq.s32.totalorder %s21, 1
      %p65 = por %p63, %p64
      %p67 = scmp.ne.s32.totalorder %s50, %s66
      %p68 = scmp.eq.s32.totalorder %s21, 0
      %p69 = por %p67, %p68
      %s70 = ssub.s32 %s15, %s22
      %p71 = scmp.eq.s32.totalorder %s70, 0
      %s73 = sadd.s32 %s72, 1
      %s74 = scalar_select %p71, %s72, %s73
      %p77 = pneg %p71
      %p78 = scmp.eq.s32.totalorder %s15, 1
      %p79 = por %p77, %p78
      %p80 = scmp.ne.s32.totalorder %s72, %s75
      %p81 = scmp.eq.s32.totalorder %s15, 0
      %p82 = por %p80, %p81
      %p83 = scmp.ne.s32.totalorder %s72, %s75
      %p84 = scmp.eq.s32.totalorder %s20, 1
      %p85 = por %p83, %p84
      %p86 = scmp.ne.s32.totalorder %s75, %s76
      %p87 = scmp.eq.s32.totalorder %s20, 0
      %p88 = por %p86, %p87
      %p89 = scmp.ne.s32.totalorder %s75, %s76
      %p90 = scmp.eq.s32.totalorder %s21, 1
      %p91 = por %p89, %p90
      %p93 = scmp.ne.s32.totalorder %s76, %s92
      %p94 = scmp.eq.s32.totalorder %s21, 0
      %p95 = por %p93, %p94
      %p96 = scmp.le.s32.totalorder 1, %s15
      %p97 = scmp.lt.s32.totalorder %s15, 3
      %p98 = pnand %p96, %p97
      %p99 = pneg %p98
      // Predicated region
      $region9: #{tpu_custom_call.1} parent=5 // pred_check
        _
      $region10: #{tpu_custom_call.1} parent=5 // pred_check_branch
        %101 = sbr.rel (%p98) target = $region12
      $region11: #{tpu_custom_call.1} parent=5 // pred_region
        %s102 = ssub.s32 %s15, 1
        // Predicated region
        $region13: #{tpu_custom_call.1} parent=11 // pred_check
          %p103 = pneg %p36
        $region14: #{tpu_custom_call.1} parent=11 // pred_check_branch
          %105 = sbr.rel (%p103) target = $region16
        $region15: #{tpu_custom_call.1} parent=11 // pred_region
          %s107 = ssub.s32 128, 128
          %108 = vsyncadd [#allocation3], %s107
          %s110 = sshll.u32 [#allocation2], 4
          %s111 = int_to_ptr.vmem [resolvable:$true] %s110
          %113 = dma.hbm_to_vmem [thread:$0]  %s0, 128, %s111, [#allocation3]
        $region16: #{tpu_custom_call.1} parent=11 // pred_fallthru
          _
      $region12: #{tpu_custom_call.1} parent=5 // pred_fallthru
        _
      %p114 = scmp.lt.s32.totalorder %s15, 2
      // Predicated region
      $region17: #{tpu_custom_call.1} parent=5 // pred_check
        %p115 = pneg %p114
      $region18: #{tpu_custom_call.1} parent=5 // pred_check_branch
        %117 = sbr.rel (%p115) target = $region20
      $region19: #{tpu_custom_call.1} parent=5 // pred_region
        // Predicated region
        $region21: #{tpu_custom_call.1} parent=19 // pred_check
          %p118 = pneg %p56
        $region22: #{tpu_custom_call.1} parent=19 // pred_check_branch
          %120 = sbr.rel (%p118) target = $region24
        $region23: #{tpu_custom_call.1} parent=19 // pred_region
          %s121 = sand.u32 %s46, 1
          %s122 = scalar_lea.sflag [#allocation6], %s121
          %s123 = sand.u32 %s46, 1
          %s124 = smul.addr %s123, 8
          %s125 = scalar_lea.vmem [#allocation5], %s124
          %s127 = ssub.s32 128, 128
          %128 = vsyncadd %s122, %s127
          %s129 = smul.addr %s15, 128
          %s130 = scalar_lea.hbm %s1, %s129
          %s132 = sshll.u32 %s125, 4
          %s133 = int_to_ptr.vmem [resolvable:$true] %s132
          %135 = dma.hbm_to_vmem [thread:$0]  %s130, 128, %s133, %s122
        $region24: #{tpu_custom_call.1} parent=19 // pred_fallthru
          _
      $region20: #{tpu_custom_call.1} parent=5 // pred_fallthru
        _
      %p136 = scmp.le.s32.totalorder 1, %s15
      %p137 = scmp.lt.s32.totalorder %s15, 3
      %p138 = pnand %p136, %p137
      %p139 = pneg %p138
      // Predicated region
      $region25: #{tpu_custom_call.1} parent=5 // pred_check
        _
      $region26: #{tpu_custom_call.1} parent=5 // pred_check_branch
        %141 = sbr.rel (%p138) target = $region28
      $region27: #{tpu_custom_call.1} parent=5 // pred_region
        %s142 = ssub.s32 %s15, 1
        // Predicated region
        $region29: #{tpu_custom_call.1} parent=27 // pred_check
          %p143 = pneg %p36
        $region30: #{tpu_custom_call.1} parent=27 // pred_check_branch
          %145 = sbr.rel (%p143) target = $region32
        $region31: #{tpu_custom_call.1} parent=27 // pred_region
          %146 = dma.done [#allocation3], 128
        $region32: #{tpu_custom_call.1} parent=27 // pred_fallthru
          _
        %s147 = sand.u32 %s49, 1
        %s148 = scalar_lea.sflag [#allocation6], %s147
        %s149 = sand.u32 %s49, 1
        %s150 = smul.addr %s149, 8
        %s151 = scalar_lea.vmem [#allocation5], %s150
        // Predicated region
        $region33: #{tpu_custom_call.1} parent=27 // pred_check
          %p152 = pneg %p62
        $region34: #{tpu_custom_call.1} parent=27 // pred_check_branch
          %154 = sbr.rel (%p152) target = $region36
        $region35: #{tpu_custom_call.1} parent=27 // pred_region
          %155 = dma.done %s148, 128
        $region36: #{tpu_custom_call.1} parent=27 // pred_fallthru
          _
        %p156 = pneg %p36
        %p157 = pneg %p33
        %s158 = sand.u32 %s49, 1
        %s159 = scalar_lea.sflag [#allocation6], %s158
        %s160 = sand.u32 %s49, 1
        %s161 = smul.addr %s160, 8
        %s162 = scalar_lea.vmem [#allocation5], %s161
        %p163 = pneg %p62
        %p164 = pneg %p59
        %p165 = pneg %p88
        %p166 = pneg %p85
        %s167 = sand.u32 %s75, 1
        %s168 = scalar_lea.sflag [#allocation4], %s167
        %s169 = sand.u32 %s75, 1
        %s170 = smul.addr %s169, 8
        %s171 = scalar_lea.vmem [#allocation7], %s170
        %v172 = vld [vmem:[%s151] sm:$0xff]
        %v173 = vld [vmem:[#allocation2] sm:$0xff]
        %v174 = vadd.f32 %v172, %v173
        %175 = vst [vmem:[%s171] sm:$0xff] %v174
        %s176 = sand.u32 %s75, 1
        %s177 = scalar_lea.sflag [#allocation4], %s176
        %s178 = sand.u32 %s75, 1
        %s179 = smul.addr %s178, 8
        %s180 = scalar_lea.vmem [#allocation7], %s179
        // Predicated region
        $region37: #{tpu_custom_call.1} parent=27 // pred_check
          %p181 = pneg %p85
        $region38: #{tpu_custom_call.1} parent=27 // pred_check_branch
          %183 = sbr.rel (%p181) target = $region40
        $region39: #{tpu_custom_call.1} parent=27 // pred_region
          %s185 = ssub.s32 128, 128
          %186 = vsyncadd %s177, %s185
          %s187 = smul.addr %s20, 128
          %s188 = scalar_lea.hbm %s2, %s187
          %s190 = sshll.u32 %s180, 4
          %s191 = int_to_ptr.vmem [resolvable:$true] %s190
          %193 = dma.vmem_to_hbm [thread:$0]  %s191, 128, %s188, %s177
        $region40: #{tpu_custom_call.1} parent=27 // pred_fallthru
          _
      $region28: #{tpu_custom_call.1} parent=5 // pred_fallthru
        _
      %p194 = scmp.le.s32.totalorder 2, %s15
      // Predicated region
      $region41: #{tpu_custom_call.1} parent=5 // pred_check
        %p195 = pneg %p194
      $region42: #{tpu_custom_call.1} parent=5 // pred_check_branch
        %197 = sbr.rel (%p195) target = $region44
      $region43: #{tpu_custom_call.1} parent=5 // pred_region
        %s198 = ssub.s32 %s15, 2
        // Predicated region
        $region45: #{tpu_custom_call.1} parent=43 // pred_check
          %p199 = pneg %p91
        $region46: #{tpu_custom_call.1} parent=43 // pred_check_branch
          %201 = sbr.rel (%p199) target = $region48
        $region47: #{tpu_custom_call.1} parent=43 // pred_region
          %s202 = sand.u32 %s76, 1
          %s203 = scalar_lea.sflag [#allocation4], %s202
          %s204 = sand.u32 %s76, 1
          %s205 = smul.addr %s204, 8
          %s206 = scalar_lea.vmem [#allocation7], %s205
          %207 = dma.done %s203, 128
        $region48: #{tpu_custom_call.1} parent=43 // pred_fallthru
          _
      $region44: #{tpu_custom_call.1} parent=5 // pred_fallthru
        _
    $region6: #{tpu_custom_call.1} parent=1 // loop_footer
      %s19 = sadd.s32 1, %s15
    $region7: #{tpu_custom_call.1} parent=1 // loop_footer_branch
      %14 = sbr.rel target = $region3
    $region8: #{tpu_custom_call.1} parent=1 // loop_exit
      _
    %208 = vsyncpa [#allocation3], 1
    %s209 = scalar_lea.sflag [#allocation3], 1
    %210 = vsyncpa %s209, 1
    %211 = vsyncpa [#allocation6], 1
    %s212 = scalar_lea.sflag [#allocation6], 1
    %213 = vsyncpa %s212, 1
    %214 = vsyncpa [#allocation4], 1
    %s215 = scalar_lea.sflag [#allocation4], 1
    %216 = vsyncpa %s215, 1

// kernel: _forward_impl.1
$region0: #{_forward_impl.1}
  #allocation0 [shape = 'u32[]', space=smem, size = 0x4, offset = 0x4, fixed_abs, tag = 'smem constant byte address 0x4 - core index']
  #allocation1 [shape = 'u32[144,128]{1,0:T(1,128)}', space=vmem, size = 0x12000, scoped, tag = 'internal scratch']
  %s0 = inlined_call_operand.vmem [shape: f32[8,128], index: 0, kind: input, shape index: {}]
  %s1 = inlined_call_operand.vmem [shape: f32[128,256], index: 1, kind: input, shape index: {}]
  %s2 = inlined_call_operand.hbm [shape: f32[256,256], index: 2, kind: input, shape index: {}]
  %s3 = inlined_call_operand.hbm [shape: f32[256,256], index: 3, kind: input, shape index: {}]
  %s4 = inlined_call_operand.hbm [shape: f32[256,256], index: 4, kind: input, shape index: {}]
  %s5 = inlined_call_operand.hbm [shape: f32[256,256], index: 5, kind: input, shape index: {}]
  %s6 = inlined_call_operand.vmem [shape: f32[4,256], index: 6, kind: input, shape index: {}]
  %s7 = inlined_call_operand.vmem [shape: f32[4,128], index: 7, kind: input, shape index: {}]
  %s8 = inlined_call_operand.vmem [shape: f32[8,128], index: 8, kind: output, shape index: {0}]
  %s9 = inlined_call_operand.vmem [shape: f32[8,128], index: 9, kind: output, shape index: {1}]
  %10 = xla_tuple %s8, %s9
  %s11 = sld [smem:[#allocation0]]
  $region66: #{_forward_impl.1} parent=0
    _
  %s13 = ssub.s32 1, %s11
  %s14 = scalar_select 0, %s13, %s11
  $region1: #{_forward_impl.1} parent=0
    #allocation2 [shape = 'u8[262144]{0}', space=vmem, size = 0x40000, scoped, tag = 'input window, operand 2, single buffered']
    #allocation3 [shape = 's32[1]{0}', space=sflag, size = 0x4, scoped, tag = 'scoped memory for _forward_impl.1']
    #allocation4 [shape = 'u8[262144]{0}', space=vmem, size = 0x40000, scoped, tag = 'input window, operand 3, single buffered']
    #allocation5 [shape = 's32[1]{0}', space=sflag, size = 0x4, scoped, tag = 'scoped memory for _forward_impl.1']
    #allocation6 [shape = 'u8[262144]{0}', space=vmem, size = 0x40000, scoped, tag = 'input window, operand 4, single buffered']
    #allocation7 [shape = 'u8[262144]{0}', space=vmem, size = 0x40000, scoped, tag = 'input window, operand 5, single buffered']
    #allocation8 [shape = 's32[1]{0}', space=sflag, size = 0x4, scoped, tag = 'scoped memory for _forward_impl.1']
    %15 = vsyncpa [#allocation3], 0
    %16 = vsyncpa [#allocation5], 0
    %17 = vsyncpa [#allocation8], 0
    // Predicated region
    $region2: #{_forward_impl.1} parent=1 // pred_check
      _
    $region3: #{_forward_impl.1} parent=1 // pred_check_branch
      %19 = sbr.rel (0) target = $region5
    $region4: #{_forward_impl.1} parent=1 // pred_region
      _
    $region5: #{_forward_impl.1} parent=1 // pred_fallthru
      _
    // Predicated region
    $region6: #{_forward_impl.1} parent=1 // pred_check
      _
    $region7: #{_forward_impl.1} parent=1 // pred_check_branch
      %21 = sbr.rel (0) target = $region9
    $region8: #{_forward_impl.1} parent=1 // pred_region
      _
    $region9: #{_forward_impl.1} parent=1 // pred_fallthru
      _
    // Predicated region
    $region10: #{_forward_impl.1} parent=1 // pred_check
      _
    $region11: #{_forward_impl.1} parent=1 // pred_check_branch
      %23 = sbr.rel (0) target = $region13
    $region12: #{_forward_impl.1} parent=1 // pred_region
      %s25 = ssub.s32 8192, 8192
      %26 = vsyncadd [#allocation3], %s25
      %s27 = sshll.u32 [#allocation2], 4
      %s28 = int_to_ptr.vmem [resolvable:$true] %s27
      %33 = dma.hbm_to_vmem [thread:$0]  %s2, 8192, %s28, [#allocation3], 256, 256, 16
    $region13: #{_forward_impl.1} parent=1 // pred_fallthru
      _
    // Predicated region
    $region14: #{_forward_impl.1} parent=1 // pred_check
      _
    $region15: #{_forward_impl.1} parent=1 // pred_check_branch
      %35 = sbr.rel (0) target = $region17
    $region16: #{_forward_impl.1} parent=1 // pred_region
      %s37 = ssub.s32 8192, 8192
      %38 = vsyncadd [#allocation5], %s37
      %s39 = sshll.u32 [#allocation4], 4
      %s40 = int_to_ptr.vmem [resolvable:$true] %s39
      %45 = dma.hbm_to_vmem [thread:$0]  %s3, 8192, %s40, [#allocation5], 256, 256, 16
    $region17: #{_forward_impl.1} parent=1 // pred_fallthru
      _
    // Predicated region
    $region18: #{_forward_impl.1} parent=1 // pred_check
      _
    $region19: #{_forward_impl.1} parent=1 // pred_check_branch
      %47 = sbr.rel (0) target = $region21
    $region20: #{_forward_impl.1} parent=1 // pred_region
      %s49 = ssub.s32 8192, 8192
      %50 = vsyncadd [#allocation5], %s49
      %s51 = sshll.u32 [#allocation6], 4
      %s52 = int_to_ptr.vmem [resolvable:$true] %s51
      %57 = dma.hbm_to_vmem [thread:$0]  %s4, 8192, %s52, [#allocation5], 256, 256, 16
    $region21: #{_forward_impl.1} parent=1 // pred_fallthru
      _
    // Predicated region
    $region22: #{_forward_impl.1} parent=1 // pred_check
      _
    $region23: #{_forward_impl.1} parent=1 // pred_check_branch
      %59 = sbr.rel (0) target = $region25
    $region24: #{_forward_impl.1} parent=1 // pred_region
      %s61 = ssub.s32 8192, 8192
      %62 = vsyncadd [#allocation8], %s61
      %s63 = sshll.u32 [#allocation7], 4
      %s64 = int_to_ptr.vmem [resolvable:$true] %s63
      %69 = dma.hbm_to_vmem [thread:$0]  %s5, 8192, %s64, [#allocation8], 256, 256, 16
    $region25: #{_forward_impl.1} parent=1 // pred_fallthru
      _
    // Predicated region
    $region26: #{_forward_impl.1} parent=1 // pred_check
      _
    $region27: #{_forward_impl.1} parent=1 // pred_check_branch
      %71 = sbr.rel (0) target = $region29
    $region28: #{_forward_impl.1} parent=1 // pred_region
      _
    $region29: #{_forward_impl.1} parent=1 // pred_fallthru
      _
    // Predicated region
    $region30: #{_forward_impl.1} parent=1 // pred_check
      _
    $region31: #{_forward_impl.1} parent=1 // pred_check_branch
      %73 = sbr.rel (0) target = $region33
    $region32: #{_forward_impl.1} parent=1 // pred_region
      _
    $region33: #{_forward_impl.1} parent=1 // pred_fallthru
      _
    // Predicated region
    $region34: #{_forward_impl.1} parent=1 // pred_check
      _
    $region35: #{_forward_impl.1} parent=1 // pred_check_branch
      %75 = sbr.rel (0) target = $region37
    $region36: #{_forward_impl.1} parent=1 // pred_region
      %76 = dma.done [#allocation3], 8192
    $region37: #{_forward_impl.1} parent=1 // pred_fallthru
      _
    // Predicated region
    $region38: #{_forward_impl.1} parent=1 // pred_check
      _
    $region39: #{_forward_impl.1} parent=1 // pred_check_branch
      %78 = sbr.rel (0) target = $region41
    $region40: #{_forward_impl.1} parent=1 // pred_region
      %79 = dma.done [#allocation5], 8192
    $region41: #{_forward_impl.1} parent=1 // pred_fallthru
      _
    // Predicated region
    $region42: #{_forward_impl.1} parent=1 // pred_check
      _
    $region43: #{_forward_impl.1} parent=1 // pred_check_branch
      %81 = sbr.rel (0) target = $region45
    $region44: #{_forward_impl.1} parent=1 // pred_region
      %82 = dma.done [#allocation5], 8192
    $region45: #{_forward_impl.1} parent=1 // pred_fallthru
      _
    // Predicated region
    $region46: #{_forward_impl.1} parent=1 // pred_check
      _
    $region47: #{_forward_impl.1} parent=1 // pred_check_branch
      %84 = sbr.rel (0) target = $region49
    $region48: #{_forward_impl.1} parent=1 // pred_region
      %85 = dma.done [#allocation8], 8192
    $region49: #{_forward_impl.1} parent=1 // pred_fallthru
      _
    %v86 = vld [vmem:[%s0] sm:$0xff]
    %v87 = vld [vmem:[%s1] sm:$0xff]
    %v88 = vld [vmem:[%s1 + $0x8] sm:$0xff]
    %v89 = vld [vmem:[%s1 + $0x10] sm:$0xff]
    %v90 = vld [vmem:[%s1 + $0x18] sm:$0xff]
    %v91 = vld [vmem:[%s1 + $0x20] sm:$0xff]
    %v92 = vld [vmem:[%s1 + $0x28] sm:$0xff]
    %v93 = vld [vmem:[%s1 + $0x30] sm:$0xff]
    %v94 = vld [vmem:[%s1 + $0x38] sm:$0xff]
    %v95 = vld [vmem:[%s1 + $0x40] sm:$0xff]
    %v96 = vld [vmem:[%s1 + $0x48] sm:$0xff]
    %v97 = vld [vmem:[%s1 + $0x50] sm:$0xff]
    %v98 = vld [vmem:[%s1 + $0x58] sm:$0xff]
    %v99 = vld [vmem:[%s1 + $0x60] sm:$0xff]
    %v100 = vld [vmem:[%s1 + $0x68] sm:$0xff]
    %v101 = vld [vmem:[%s1 + $0x70] sm:$0xff]
    %v102 = vld [vmem:[%s1 + $0x78] sm:$0xff]
    %v103 = vld [vmem:[%s1 + $0x80] sm:$0xff]
    %v104 = vld [vmem:[%s1 + $0x88] sm:$0xff]
    %v105 = vld [vmem:[%s1 + $0x90] sm:$0xff]
    %v106 = vld [vmem:[%s1 + $0x98] sm:$0xff]
    %v107 = vld [vmem:[%s1 + $0xa0] sm:$0xff]
    %v108 = vld [vmem:[%s1 + $0xa8] sm:$0xff]
    %v109 = vld [vmem:[%s1 + $0xb0] sm:$0xff]
    %v110 = vld [vmem:[%s1 + $0xb8] sm:$0xff]
    %v111 = vld [vmem:[%s1 + $0xc0] sm:$0xff]
    %v112 = vld [vmem:[%s1 + $0xc8] sm:$0xff]
    %v113 = vld [vmem:[%s1 + $0xd0] sm:$0xff]
    %v114 = vld [vmem:[%s1 + $0xd8] sm:$0xff]
    %v115 = vld [vmem:[%s1 + $0xe0] sm:$0xff]
    %v116 = vld [vmem:[%s1 + $0xe8] sm:$0xff]
    %v117 = vld [vmem:[%s1 + $0xf0] sm:$0xff]
    %v118 = vld [vmem:[%s1 + $0xf8] sm:$0xff]
    %v119 = vld [vmem:[%s6] ss:$4 sm:$0x3]
    %v121 = vlaneseq
    %v122 = vshrl.u32 %v121, 7
    %v123 = vsub.s32 0, %v122
    %v124 = vrot.slane %v119, %v123
    %v125 = vlaneseq
    %v126 = vshrl.u32 %v125, 7
    %v127 = vsub.s32 1, %v126
    %v128 = vrot.slane %v119, %v127
    %131 = vmatprep.subr.mxu0 %v118
    %132 = vmatpush1.msra.mxu0 %v117
    %133 = vmatprep.subr.mxu0 %v116
    %134 = vmatpush1.msra.mxu0 %v115
    %135 = vmatprep.subr.mxu0 %v114
    %136 = vmatpush1.msra.mxu0 %v113
    %137 = vmatprep.subr.mxu0 %v112
    %138 = vmatpush1.msra.mxu0 %v111
    %139 = vmatprep.subr.mxu0 %v110
    %140 = vmatpush1.msra.mxu0 %v109
    %141 = vmatprep.subr.mxu0 %v108
    %142 = vmatpush1.msra.mxu0 %v107
    %143 = vmatprep.subr.mxu0 %v106
    %144 = vmatpush1.msra.mxu0 %v105
    %145 = vmatprep.subr.mxu0 %v104
    %146 = vmatpush1.msra.mxu0 %v103
    %147 = vmatprep.subr.mxu0 %v102
    %148 = vmatpush1.msra.mxu0 %v101
    %149 = vmatprep.subr.mxu0 %v100
    %150 = vmatpush1.msra.mxu0 %v99
    %151 = vmatprep.subr.mxu0 %v98
    %152 = vmatpush1.msra.mxu0 %v97
    %153 = vmatprep.subr.mxu0 %v96
    %154 = vmatpush1.msra.mxu0 %v95
    %155 = vmatprep.subr.mxu0 %v94
    %156 = vmatpush1.msra.mxu0 %v93
    %157 = vmatprep.subr.mxu0 %v92
    %158 = vmatpush1.msra.mxu0 %v91
    %159 = vmatprep.subr.mxu0 %v90
    %160 = vmatpush1.msra.mxu0 %v89
    %161 = vmatprep.subr.mxu0 %v88
    %162 = vmatpush1.msra.mxu0 %v87
    %163 = vmatprep.subr.mxu0 0.0
    %164 = vmatpush2.msra.mxu0 0.0
    %165 = vmatprep.subr.mxu0 0.0
    %166 = vmatpush2.msra.mxu0 0.0
    %167 = vmatprep.subr.mxu0 0.0
    %168 = vmatpush2.msra.mxu0 0.0
    %169 = vmatprep.subr.mxu0 0.0
    %170 = vmatpush2.msra.mxu0 0.0
    %171 = vmatprep.subr.mxu0 0.0
    %172 = vmatpush2.msra.mxu0 0.0
    %173 = vmatprep.subr.mxu0 0.0
    %174 = vmatpush2.msra.mxu0 0.0
    %175 = vmatprep.subr.mxu0 0.0
    %176 = vmatpush2.msra.mxu0 0.0
    %177 = vmatprep.subr.mxu0 0.0
    %178 = vmatpush2.msra.mxu0 0.0
    %179 = vmatprep.subr.mxu0 0.0
    %180 = vmatpush2.msra.mxu0 0.0
    %181 = vmatprep.subr.mxu0 0.0
    %182 = vmatpush2.msra.mxu0 0.0
    %183 = vmatprep.subr.mxu0 0.0
    %184 = vmatpush2.msra.mxu0 0.0
    %185 = vmatprep.subr.mxu0 0.0
    %186 = vmatpush2.msra.mxu0 0.0
    %187 = vmatprep.subr.mxu0 0.0
    %188 = vmatpush2.msra.mxu0 0.0
    %189 = vmatprep.subr.mxu0 0.0
    %190 = vmatpush2.msra.mxu0 0.0
    %191 = vmatprep.subr.mxu0 0.0
    %192 = vmatpush2.msra.mxu0 0.0
    %193 = vmatprep.subr.mxu0 0.0
    %194 = vmatpush2.msra.mxu0 0.0
    %195 = vmatprep.mubr.f32.mxu0 0.0
    %196 = vmatmul.mubr.f32.gmra.mxu0 %v86
    %v197 = vpop.f32.mrf.mxu0
    %v198 = vadd.f32 %v124, %v197
    %v199 = vpop.f32.mrf.mxu0
    %v200 = vadd.f32 %v128, %v199
    %201 = vdwg.mxu0
    %v202 = vmul.f32 %v198, 0.5
    %v203 = vmul.f32 %v200, 0.5
    %v204 = vtanh.pop %v202
    %v205 = vtanh.pop %v203
    %v206 = vadd.f32 %v204, 1.0
    %v207 = vadd.f32 %v205, 1.0
    %v208 = vmul.f32 %v202, %v206
    %v209 = vmul.f32 %v203, %v207
    %v210 = vld [vmem:[#allocation2] sm:$0xff]
    %v211 = vld [vmem:[#allocation2 + $0x8] sm:$0xff]
    %v212 = vld [vmem:[#allocation2 + $0x10] sm:$0xff]
    %v213 = vld [vmem:[#allocation2 + $0x18] sm:$0xff]
    %v214 = vld [vmem:[#allocation2 + $0x20] sm:$0xff]
    %v215 = vld [vmem:[#allocation2 + $0x28] sm:$0xff]
    %v216 = vld [vmem:[#allocation2 + $0x30] sm:$0xff]
    %v217 = vld [vmem:[#allocation2 + $0x38] sm:$0xff]
    %v218 = vld [vmem:[#allocation2 + $0x40] sm:$0xff]
    %v219 = vld [vmem:[#allocation2 + $0x48] sm:$0xff]
    %v220 = vld [vmem:[#allocation2 + $0x50] sm:$0xff]
    %v221 = vld [vmem:[#allocation2 + $0x58] sm:$0xff]
    %v222 = vld [vmem:[#allocation2 + $0x60] sm:$0xff]
    %v223 = vld [vmem:[#allocation2 + $0x68] sm:$0xff]
    %v224 = vld [vmem:[#allocation2 + $0x70] sm:$0xff]
    %v225 = vld [vmem:[#allocation2 + $0x78] sm:$0xff]
    %v226 = vld [vmem:[#allocation2 + $0x80] sm:$0xff]
    %v227 = vld [vmem:[#allocation2 + $0x88] sm:$0xff]
    %v228 = vld [vmem:[#allocation2 + $0x90] sm:$0xff]
    %v229 = vld [vmem:[#allocation2 + $0x98] sm:$0xff]
    %v230 = vld [vmem:[#allocation2 + $0xa0] sm:$0xff]
    %v231 = vld [vmem:[#allocation2 + $0xa8] sm:$0xff]
    %v232 = vld [vmem:[#allocation2 + $0xb0] sm:$0xff]
    %v233 = vld [vmem:[#allocation2 + $0xb8] sm:$0xff]
    %v234 = vld [vmem:[#allocation2 + $0xc0] sm:$0xff]
    %v235 = vld [vmem:[#allocation2 + $0xc8] sm:$0xff]
    %v236 = vld [vmem:[#allocation2 + $0xd0] sm:$0xff]
    %v237 = vld [vmem:[#allocation2 + $0xd8] sm:$0xff]
    %v238 = vld [vmem:[#allocation2 + $0xe0] sm:$0xff]
    %v239 = vld [vmem:[#allocation2 + $0xe8] sm:$0xff]
    %v240 = vld [vmem:[#allocation2 + $0xf0] sm:$0xff]
    %v241 = vld [vmem:[#allocation2 + $0xf8] sm:$0xff]
    %v242 = vld [vmem:[#allocation2 + $0x100] sm:$0xff]
    %v243 = vld [vmem:[#allocation2 + $0x108] sm:$0xff]
    %v244 = vld [vmem:[#allocation2 + $0x110] sm:$0xff]
    %v245 = vld [vmem:[#allocation2 + $0x118] sm:$0xff]
    %v246 = vld [vmem:[#allocation2 + $0x120] sm:$0xff]
    %v247 = vld [vmem:[#allocation2 + $0x128] sm:$0xff]
    %v248 = vld [vmem:[#allocation2 + $0x130] sm:$0xff]
    %v249 = vld [vmem:[#allocation2 + $0x138] sm:$0xff]
    %v250 = vld [vmem:[#allocation2 + $0x140] sm:$0xff]
    %v251 = vld [vmem:[#allocation2 + $0x148] sm:$0xff]
    %v252 = vld [vmem:[#allocation2 + $0x150] sm:$0xff]
    %v253 = vld [vmem:[#allocation2 + $0x158] sm:$0xff]
    %v254 = vld [vmem:[#allocation2 + $0x160] sm:$0xff]
    %v255 = vld [vmem:[#allocation2 + $0x168] sm:$0xff]
    %v256 = vld [vmem:[#allocation2 + $0x170] sm:$0xff]
    %v257 = vld [vmem:[#allocation2 + $0x178] sm:$0xff]
    %v258 = vld [vmem:[#allocation2 + $0x180] sm:$0xff]
    %v259 = vld [vmem:[#allocation2 + $0x188] sm:$0xff]
    %v260 = vld [vmem:[#allocation2 + $0x190] sm:$0xff]
    %v261 = vld [vmem:[#allocation2 + $0x198] sm:$0xff]
    %v262 = vld [vmem:[#allocation2 + $0x1a0] sm:$0xff]
    %v263 = vld [vmem:[#allocation2 + $0x1a8] sm:$0xff]
    %v264 = vld [vmem:[#allocation2 + $0x1b0] sm:$0xff]
    %v265 = vld [vmem:[#allocation2 + $0x1b8] sm:$0xff]
    %v266 = vld [vmem:[#allocation2 + $0x1c0] sm:$0xff]
    %v267 = vld [vmem:[#allocation2 + $0x1c8] sm:$0xff]
    %v268 = vld [vmem:[#allocation2 + $0x1d0] sm:$0xff]
    %v269 = vld [vmem:[#allocation2 + $0x1d8] sm:$0xff]
    %v270 = vld [vmem:[#allocation2 + $0x1e0] sm:$0xff]
    %v271 = vld [vmem:[#allocation2 + $0x1e8] sm:$0xff]
    %v272 = vld [vmem:[#allocation2 + $0x1f0] sm:$0xff]
    %v273 = vld [vmem:[#allocation2 + $0x1f8] sm:$0xff]
    %s274 = scalar_lea.vmem %s6, 1
    %v275 = vld [vmem:[%s274] ss:$4 sm:$0x3]
    %v277 = vlaneseq
    %v278 = vshrl.u32 %v277, 7
    %v279 = vsub.s32 0, %v278
    %v280 = vrot.slane %v275, %v279
    %v281 = vlaneseq
    %v282 = vshrl.u32 %v281, 7
    %v283 = vsub.s32 1, %v282
    %v284 = vrot.slane %v275, %v283
    %287 = vmatprep.subr.mxu0 %v241
    %288 = vmatpush1.msra.mxu0 %v240
    %289 = vmatprep.subr.mxu0 %v239
    %290 = vmatpush1.msra.mxu0 %v238
    %291 = vmatprep.subr.mxu0 %v237
    %292 = vmatpush1.msra.mxu0 %v236
    %293 = vmatprep.subr.mxu0 %v235
    %294 = vmatpush1.msra.mxu0 %v234
    %295 = vmatprep.subr.mxu0 %v233
    %296 = vmatpush1.msra.mxu0 %v232
    %297 = vmatprep.subr.mxu0 %v231
    %298 = vmatpush1.msra.mxu0 %v230
    %299 = vmatprep.subr.mxu0 %v229
    %300 = vmatpush1.msra.mxu0 %v228
    %301 = vmatprep.subr.mxu0 %v227
    %302 = vmatpush1.msra.mxu0 %v226
    %303 = vmatprep.subr.mxu0 %v225
    %304 = vmatpush1.msra.mxu0 %v224
    %305 = vmatprep.subr.mxu0 %v223
    %306 = vmatpush1.msra.mxu0 %v222
    %307 = vmatprep.subr.mxu0 %v221
    %308 = vmatpush1.msra.mxu0 %v220
    %309 = vmatprep.subr.mxu0 %v219
    %310 = vmatpush1.msra.mxu0 %v218
    %311 = vmatprep.subr.mxu0 %v217
    %312 = vmatpush1.msra.mxu0 %v216
    %313 = vmatprep.subr.mxu0 %v215
    %314 = vmatpush1.msra.mxu0 %v214
    %315 = vmatprep.subr.mxu0 %v213
    %316 = vmatpush1.msra.mxu0 %v212
    %317 = vmatprep.subr.mxu0 %v211
    %318 = vmatpush1.msra.mxu0 %v210
    %319 = vmatprep.subr.mxu0 %v273
    %320 = vmatpush2.msra.mxu0 %v272
    %321 = vmatprep.subr.mxu0 %v271
    %322 = vmatpush2.msra.mxu0 %v270
    %323 = vmatprep.subr.mxu0 %v269
    %324 = vmatpush2.msra.mxu0 %v268
    %325 = vmatprep.subr.mxu0 %v267
    %326 = vmatpush2.msra.mxu0 %v266
    %327 = vmatprep.subr.mxu0 %v265
    %328 = vmatpush2.msra.mxu0 %v264
    %329 = vmatprep.subr.mxu0 %v263
    %330 = vmatpush2.msra.mxu0 %v262
    %331 = vmatprep.subr.mxu0 %v261
    %332 = vmatpush2.msra.mxu0 %v260
    %333 = vmatprep.subr.mxu0 %v259
    %334 = vmatpush2.msra.mxu0 %v258
    %335 = vmatprep.subr.mxu0 %v257
    %336 = vmatpush2.msra.mxu0 %v256
    %337 = vmatprep.subr.mxu0 %v255
    %338 = vmatpush2.msra.mxu0 %v254
    %339 = vmatprep.subr.mxu0 %v253
    %340 = vmatpush2.msra.mxu0 %v252
    %341 = vmatprep.subr.mxu0 %v251
    %342 = vmatpush2.msra.mxu0 %v250
    %343 = vmatprep.subr.mxu0 %v249
    %344 = vmatpush2.msra.mxu0 %v248
    %345 = vmatprep.subr.mxu0 %v247
    %346 = vmatpush2.msra.mxu0 %v246
    %347 = vmatprep.subr.mxu0 %v245
    %348 = vmatpush2.msra.mxu0 %v244
    %349 = vmatprep.subr.mxu0 %v243
    %350 = vmatpush2.msra.mxu0 %v242
    %351 = vmatprep.mubr.f32.mxu0 %v209
    %352 = vmatmul.mubr.f32.gmra.mxu0 %v208
    %v353 = vpop.f32.mrf.mxu0
    %v354 = vadd.f32 %v280, %v353
    %v355 = vpop.f32.mrf.mxu0
    %v356 = vadd.f32 %v284, %v355
    %357 = vdwg.mxu0
    %v358 = vmul.f32 %v354, 0.5
    %v359 = vmul.f32 %v356, 0.5
    %v360 = vtanh.pop %v358
    %v361 = vtanh.pop %v359
    %v362 = vadd.f32 %v360, 1.0
    %v363 = vadd.f32 %v361, 1.0
    %v364 = vmul.f32 %v358, %v362
    %v365 = vmul.f32 %v359, %v363
    %v366 = vld [vmem:[#allocation4] sm:$0xff]
    %v367 = vld [vmem:[#allocation4 + $0x8] sm:$0xff]
    %v368 = vld [vmem:[#allocation4 + $0x10] sm:$0xff]
    %v369 = vld [vmem:[#allocation4 + $0x18] sm:$0xff]
    %v370 = vld [vmem:[#allocation4 + $0x20] sm:$0xff]
    %v371 = vld [vmem:[#allocation4 + $0x28] sm:$0xff]
    %v372 = vld [vmem:[#allocation4 + $0x30] sm:$0xff]
    %v373 = vld [vmem:[#allocation4 + $0x38] sm:$0xff]
    %v374 = vld [vmem:[#allocation4 + $0x40] sm:$0xff]
    %v375 = vld [vmem:[#allocation4 + $0x48] sm:$0xff]
    %v376 = vld [vmem:[#allocation4 + $0x50] sm:$0xff]
    %v377 = vld [vmem:[#allocation4 + $0x58] sm:$0xff]
    %v378 = vld [vmem:[#allocation4 + $0x60] sm:$0xff]
    %v379 = vld [vmem:[#allocation4 + $0x68] sm:$0xff]
    %v380 = vld [vmem:[#allocation4 + $0x70] sm:$0xff]
    %v381 = vld [vmem:[#allocation4 + $0x78] sm:$0xff]
    %v382 = vld [vmem:[#allocation4 + $0x80] sm:$0xff]
    %v383 = vld [vmem:[#allocation4 + $0x88] sm:$0xff]
    %v384 = vld [vmem:[#allocation4 + $0x90] sm:$0xff]
    %v385 = vld [vmem:[#allocation4 + $0x98] sm:$0xff]
    %v386 = vld [vmem:[#allocation4 + $0xa0] sm:$0xff]
    %v387 = vld [vmem:[#allocation4 + $0xa8] sm:$0xff]
    %v388 = vld [vmem:[#allocation4 + $0xb0] sm:$0xff]
    %v389 = vld [vmem:[#allocation4 + $0xb8] sm:$0xff]
    %v390 = vld [vmem:[#allocation4 + $0xc0] sm:$0xff]
    %v391 = vld [vmem:[#allocation4 + $0xc8] sm:$0xff]
    %v392 = vld [vmem:[#allocation4 + $0xd0] sm:$0xff]
    %v393 = vld [vmem:[#allocation4 + $0xd8] sm:$0xff]
    %v394 = vld [vmem:[#allocation4 + $0xe0] sm:$0xff]
    %v395 = vld [vmem:[#allocation4 + $0xe8] sm:$0xff]
    %v396 = vld [vmem:[#allocation4 + $0xf0] sm:$0xff]
    %v397 = vld [vmem:[#allocation4 + $0xf8] sm:$0xff]
    %v398 = vld [vmem:[#allocation4 + $0x100] sm:$0xff]
    %v399 = vld [vmem:[#allocation4 + $0x108] sm:$0xff]
    %v400 = vld [vmem:[#allocation4 + $0x110] sm:$0xff]
    %v401 = vld [vmem:[#allocation4 + $0x118] sm:$0xff]
    %v402 = vld [vmem:[#allocation4 + $0x120] sm:$0xff]
    %v403 = vld [vmem:[#allocation4 + $0x128] sm:$0xff]
    %v404 = vld [vmem:[#allocation4 + $0x130] sm:$0xff]
    %v405 = vld [vmem:[#allocation4 + $0x138] sm:$0xff]
    %v406 = vld [vmem:[#allocation4 + $0x140] sm:$0xff]
    %v407 = vld [vmem:[#allocation4 + $0x148] sm:$0xff]
    %v408 = vld [vmem:[#allocation4 + $0x150] sm:$0xff]
    %v409 = vld [vmem:[#allocation4 + $0x158] sm:$0xff]
    %v410 = vld [vmem:[#allocation4 + $0x160] sm:$0xff]
    %v411 = vld [vmem:[#allocation4 + $0x168] sm:$0xff]
    %v412 = vld [vmem:[#allocation4 + $0x170] sm:$0xff]
    %v413 = vld [vmem:[#allocation4 + $0x178] sm:$0xff]
    %v414 = vld [vmem:[#allocation4 + $0x180] sm:$0xff]
    %v415 = vld [vmem:[#allocation4 + $0x188] sm:$0xff]
    %v416 = vld [vmem:[#allocation4 + $0x190] sm:$0xff]
    %v417 = vld [vmem:[#allocation4 + $0x198] sm:$0xff]
    %v418 = vld [vmem:[#allocation4 + $0x1a0] sm:$0xff]
    %v419 = vld [vmem:[#allocation4 + $0x1a8] sm:$0xff]
    %v420 = vld [vmem:[#allocation4 + $0x1b0] sm:$0xff]
    %v421 = vld [vmem:[#allocation4 + $0x1b8] sm:$0xff]
    %v422 = vld [vmem:[#allocation4 + $0x1c0] sm:$0xff]
    %v423 = vld [vmem:[#allocation4 + $0x1c8] sm:$0xff]
    %v424 = vld [vmem:[#allocation4 + $0x1d0] sm:$0xff]
    %v425 = vld [vmem:[#allocation4 + $0x1d8] sm:$0xff]
    %v426 = vld [vmem:[#allocation4 + $0x1e0] sm:$0xff]
    %v427 = vld [vmem:[#allocation4 + $0x1e8] sm:$0xff]
    %v428 = vld [vmem:[#allocation4 + $0x1f0] sm:$0xff]
    %v429 = vld [vmem:[#allocation4 + $0x1f8] sm:$0xff]
    %s430 = scalar_lea.vmem %s6, 2
    %v431 = vld [vmem:[%s430] ss:$4 sm:$0x3]
    %v433 = vlaneseq
    %v434 = vshrl.u32 %v433, 7
    %v435 = vsub.s32 0, %v434
    %v436 = vrot.slane %v431, %v435
    %v437 = vlaneseq
    %v438 = vshrl.u32 %v437, 7
    %v439 = vsub.s32 1, %v438
    %v440 = vrot.slane %v431, %v439
    %443 = vmatprep.subr.mxu0 %v397
    %444 = vmatpush1.msra.mxu0 %v396
    %445 = vmatprep.subr.mxu0 %v395
    %446 = vmatpush1.msra.mxu0 %v394
    %447 = vmatprep.subr.mxu0 %v393
    %448 = vmatpush1.msra.mxu0 %v392
    %449 = vmatprep.subr.mxu0 %v391
    %450 = vmatpush1.msra.mxu0 %v390
    %451 = vmatprep.subr.mxu0 %v389
    %452 = vmatpush1.msra.mxu0 %v388
    %453 = vmatprep.subr.mxu0 %v387
    %454 = vmatpush1.msra.mxu0 %v386
    %455 = vmatprep.subr.mxu0 %v385
    %456 = vmatpush1.msra.mxu0 %v384
    %457 = vmatprep.subr.mxu0 %v383
    %458 = vmatpush1.msra.mxu0 %v382
    %459 = vmatprep.subr.mxu0 %v381
    %460 = vmatpush1.msra.mxu0 %v380
    %461 = vmatprep.subr.mxu0 %v379
    %462 = vmatpush1.msra.mxu0 %v378
    %463 = vmatprep.subr.mxu0 %v377
    %464 = vmatpush1.msra.mxu0 %v376
    %465 = vmatprep.subr.mxu0 %v375
    %466 = vmatpush1.msra.mxu0 %v374
    %467 = vmatprep.subr.mxu0 %v373
    %468 = vmatpush1.msra.mxu0 %v372
    %469 = vmatprep.subr.mxu0 %v371
    %470 = vmatpush1.msra.mxu0 %v370
    %471 = vmatprep.subr.mxu0 %v369
    %472 = vmatpush1.msra.mxu0 %v368
    %473 = vmatprep.subr.mxu0 %v367
    %474 = vmatpush1.msra.mxu0 %v366
    %475 = vmatprep.subr.mxu0 %v429
    %476 = vmatpush2.msra.mxu0 %v428
    %477 = vmatprep.subr.mxu0 %v427
    %478 = vmatpush2.msra.mxu0 %v426
    %479 = vmatprep.subr.mxu0 %v425
    %480 = vmatpush2.msra.mxu0 %v424
    %481 = vmatprep.subr.mxu0 %v423
    %482 = vmatpush2.msra.mxu0 %v422
    %483 = vmatprep.subr.mxu0 %v421
    %484 = vmatpush2.msra.mxu0 %v420
    %485 = vmatprep.subr.mxu0 %v419
    %486 = vmatpush2.msra.mxu0 %v418
    %487 = vmatprep.subr.mxu0 %v417
    %488 = vmatpush2.msra.mxu0 %v416
    %489 = vmatprep.subr.mxu0 %v415
    %490 = vmatpush2.msra.mxu0 %v414
    %491 = vmatprep.subr.mxu0 %v413
    %492 = vmatpush2.msra.mxu0 %v412
    %493 = vmatprep.subr.mxu0 %v411
    %494 = vmatpush2.msra.mxu0 %v410
    %495 = vmatprep.subr.mxu0 %v409
    %496 = vmatpush2.msra.mxu0 %v408
    %497 = vmatprep.subr.mxu0 %v407
    %498 = vmatpush2.msra.mxu0 %v406
    %499 = vmatprep.subr.mxu0 %v405
    %500 = vmatpush2.msra.mxu0 %v404
    %501 = vmatprep.subr.mxu0 %v403
    %502 = vmatpush2.msra.mxu0 %v402
    %503 = vmatprep.subr.mxu0 %v401
    %504 = vmatpush2.msra.mxu0 %v400
    %505 = vmatprep.subr.mxu0 %v399
    %506 = vmatpush2.msra.mxu0 %v398
    %507 = vmatprep.mubr.f32.mxu0 %v365
    %508 = vmatmul.mubr.f32.gmra.mxu0 %v364
    %v509 = vpop.f32.mrf.mxu0
    %v510 = vadd.f32 %v436, %v509
    %v511 = vpop.f32.mrf.mxu0
    %v512 = vadd.f32 %v440, %v511
    %513 = vdwg.mxu0
    %v514 = vmul.f32 %v510, 0.5
    %v515 = vmul.f32 %v512, 0.5
    %v516 = vtanh.pop %v514
    %v517 = vtanh.pop %v515
    %v518 = vadd.f32 %v516, 1.0
    %v519 = vadd.f32 %v517, 1.0
    %v520 = vmul.f32 %v514, %v518
    %v521 = vmul.f32 %v515, %v519
    %v522 = vld [vmem:[#allocation6] sm:$0xff]
    %v523 = vld [vmem:[#allocation6 + $0x8] sm:$0xff]
    %v524 = vld [vmem:[#allocation6 + $0x10] sm:$0xff]
    %v525 = vld [vmem:[#allocation6 + $0x18] sm:$0xff]
    %v526 = vld [vmem:[#allocation6 + $0x20] sm:$0xff]
    %v527 = vld [vmem:[#allocation6 + $0x28] sm:$0xff]
    %v528 = vld [vmem:[#allocation6 + $0x30] sm:$0xff]
    %v529 = vld [vmem:[#allocation6 + $0x38] sm:$0xff]
    %v530 = vld [vmem:[#allocation6 + $0x40] sm:$0xff]
    %v531 = vld [vmem:[#allocation6 + $0x48] sm:$0xff]
    %v532 = vld [vmem:[#allocation6 + $0x50] sm:$0xff]
    %v533 = vld [vmem:[#allocation6 + $0x58] sm:$0xff]
    %v534 = vld [vmem:[#allocation6 + $0x60] sm:$0xff]
    %v535 = vld [vmem:[#allocation6 + $0x68] sm:$0xff]
    %v536 = vld [vmem:[#allocation6 + $0x70] sm:$0xff]
    %v537 = vld [vmem:[#allocation6 + $0x78] sm:$0xff]
    %v538 = vld [vmem:[#allocation6 + $0x80] sm:$0xff]
    %v539 = vld [vmem:[#allocation6 + $0x88] sm:$0xff]
    %v540 = vld [vmem:[#allocation6 + $0x90] sm:$0xff]
    %v541 = vld [vmem:[#allocation6 + $0x98] sm:$0xff]
    %v542 = vld [vmem:[#allocation6 + $0xa0] sm:$0xff]
    %v543 = vld [vmem:[#allocation6 + $0xa8] sm:$0xff]
    %v544 = vld [vmem:[#allocation6 + $0xb0] sm:$0xff]
    %v545 = vld [vmem:[#allocation6 + $0xb8] sm:$0xff]
    %v546 = vld [vmem:[#allocation6 + $0xc0] sm:$0xff]
    %v547 = vld [vmem:[#allocation6 + $0xc8] sm:$0xff]
    %v548 = vld [vmem:[#allocation6 + $0xd0] sm:$0xff]
    %v549 = vld [vmem:[#allocation6 + $0xd8] sm:$0xff]
    %v550 = vld [vmem:[#allocation6 + $0xe0] sm:$0xff]
    %v551 = vld [vmem:[#allocation6 + $0xe8] sm:$0xff]
    %v552 = vld [vmem:[#allocation6 + $0xf0] sm:$0xff]
    %v553 = vld [vmem:[#allocation6 + $0xf8] sm:$0xff]
    %v554 = vld [vmem:[#allocation6 + $0x100] sm:$0xff]
    %v555 = vld [vmem:[#allocation6 + $0x108] sm:$0xff]
    %v556 = vld [vmem:[#allocation6 + $0x110] sm:$0xff]
    %v557 = vld [vmem:[#allocation6 + $0x118] sm:$0xff]
    %v558 = vld [vmem:[#allocation6 + $0x120] sm:$0xff]
    %v559 = vld [vmem:[#allocation6 + $0x128] sm:$0xff]
    %v560 = vld [vmem:[#allocation6 + $0x130] sm:$0xff]
    %v561 = vld [vmem:[#allocation6 + $0x138] sm:$0xff]
    %v562 = vld [vmem:[#allocation6 + $0x140] sm:$0xff]
    %v563 = vld [vmem:[#allocation6 + $0x148] sm:$0xff]
    %v564 = vld [vmem:[#allocation6 + $0x150] sm:$0xff]
    %v565 = vld [vmem:[#allocation6 + $0x158] sm:$0xff]
    %v566 = vld [vmem:[#allocation6 + $0x160] sm:$0xff]
    %v567 = vld [vmem:[#allocation6 + $0x168] sm:$0xff]
    %v568 = vld [vmem:[#allocation6 + $0x170] sm:$0xff]
    %v569 = vld [vmem:[#allocation6 + $0x178] sm:$0xff]
    %v570 = vld [vmem:[#allocation6 + $0x180] sm:$0xff]
    %v571 = vld [vmem:[#allocation6 + $0x188] sm:$0xff]
    %v572 = vld [vmem:[#allocation6 + $0x190] sm:$0xff]
    %v573 = vld [vmem:[#allocation6 + $0x198] sm:$0xff]
    %v574 = vld [vmem:[#allocation6 + $0x1a0] sm:$0xff]
    %v575 = vld [vmem:[#allocation6 + $0x1a8] sm:$0xff]
    %v576 = vld [vmem:[#allocation6 + $0x1b0] sm:$0xff]
    %v577 = vld [vmem:[#allocation6 + $0x1b8] sm:$0xff]
    %v578 = vld [vmem:[#allocation6 + $0x1c0] sm:$0xff]
    %v579 = vld [vmem:[#allocation6 + $0x1c8] sm:$0xff]
    %v580 = vld [vmem:[#allocation6 + $0x1d0] sm:$0xff]
    %v581 = vld [vmem:[#allocation6 + $0x1d8] sm:$0xff]
    %v582 = vld [vmem:[#allocation6 + $0x1e0] sm:$0xff]
    %v583 = vld [vmem:[#allocation6 + $0x1e8] sm:$0xff]
    %v584 = vld [vmem:[#allocation6 + $0x1f0] sm:$0xff]
    %v585 = vld [vmem:[#allocation6 + $0x1f8] sm:$0xff]
    %s586 = scalar_lea.vmem %s6, 3
    %v587 = vld [vmem:[%s586] ss:$4 sm:$0x3]
    %v589 = vlaneseq
    %v590 = vshrl.u32 %v589, 7
    %v591 = vsub.s32 0, %v590
    %v592 = vrot.slane %v587, %v591
    %v593 = vlaneseq
    %v594 = vshrl.u32 %v593, 7
    %v595 = vsub.s32 1, %v594
    %v596 = vrot.slane %v587, %v595
    %599 = vmatprep.subr.mxu0 %v553
    %600 = vmatpush1.msra.mxu0 %v552
    %601 = vmatprep.subr.mxu0 %v551
    %602 = vmatpush1.msra.mxu0 %v550
    %603 = vmatprep.subr.mxu0 %v549
    %604 = vmatpush1.msra.mxu0 %v548
    %605 = vmatprep.subr.mxu0 %v547
    %606 = vmatpush1.msra.mxu0 %v546
    %607 = vmatprep.subr.mxu0 %v545
    %608 = vmatpush1.msra.mxu0 %v544
    %609 = vmatprep.subr.mxu0 %v543
    %610 = vmatpush1.msra.mxu0 %v542
    %611 = vmatprep.subr.mxu0 %v541
    %612 = vmatpush1.msra.mxu0 %v540
    %613 = vmatprep.subr.mxu0 %v539
    %614 = vmatpush1.msra.mxu0 %v538
    %615 = vmatprep.subr.mxu0 %v537
    %616 = vmatpush1.msra.mxu0 %v536
    %617 = vmatprep.subr.mxu0 %v535
    %618 = vmatpush1.msra.mxu0 %v534
    %619 = vmatprep.subr.mxu0 %v533
    %620 = vmatpush1.msra.mxu0 %v532
    %621 = vmatprep.subr.mxu0 %v531
    %622 = vmatpush1.msra.mxu0 %v530
    %623 = vmatprep.subr.mxu0 %v529
    %624 = vmatpush1.msra.mxu0 %v528
    %625 = vmatprep.subr.mxu0 %v527
    %626 = vmatpush1.msra.mxu0 %v526
    %627 = vmatprep.subr.mxu0 %v525
    %628 = vmatpush1.msra.mxu0 %v524
    %629 = vmatprep.subr.mxu0 %v523
    %630 = vmatpush1.msra.mxu0 %v522
    %631 = vmatprep.subr.mxu0 %v585
    %632 = vmatpush2.msra.mxu0 %v584
    %633 = vmatprep.subr.mxu0 %v583
    %634 = vmatpush2.msra.mxu0 %v582
    %635 = vmatprep.subr.mxu0 %v581
    %636 = vmatpush2.msra.mxu0 %v580
    %637 = vmatprep.subr.mxu0 %v579
    %638 = vmatpush2.msra.mxu0 %v578
    %639 = vmatprep.subr.mxu0 %v577
    %640 = vmatpush2.msra.mxu0 %v576
    %641 = vmatprep.subr.mxu0 %v575
    %642 = vmatpush2.msra.mxu0 %v574
    %643 = vmatprep.subr.mxu0 %v573
    %644 = vmatpush2.msra.mxu0 %v572
    %645 = vmatprep.subr.mxu0 %v571
    %646 = vmatpush2.msra.mxu0 %v570
    %647 = vmatprep.subr.mxu0 %v569
    %648 = vmatpush2.msra.mxu0 %v568
    %649 = vmatprep.subr.mxu0 %v567
    %650 = vmatpush2.msra.mxu0 %v566
    %651 = vmatprep.subr.mxu0 %v565
    %652 = vmatpush2.msra.mxu0 %v564
    %653 = vmatprep.subr.mxu0 %v563
    %654 = vmatpush2.msra.mxu0 %v562
    %655 = vmatprep.subr.mxu0 %v561
    %656 = vmatpush2.msra.mxu0 %v560
    %657 = vmatprep.subr.mxu0 %v559
    %658 = vmatpush2.msra.mxu0 %v558
    %659 = vmatprep.subr.mxu0 %v557
    %660 = vmatpush2.msra.mxu0 %v556
    %661 = vmatprep.subr.mxu0 %v555
    %662 = vmatpush2.msra.mxu0 %v554
    %663 = vmatprep.mubr.f32.mxu0 %v521
    %664 = vmatmul.mubr.f32.gmra.mxu0 %v520
    %v665 = vpop.f32.mrf.mxu0
    %v666 = vadd.f32 %v592, %v665
    %v667 = vpop.f32.mrf.mxu0
    %v668 = vadd.f32 %v596, %v667
    %669 = vdwg.mxu0
    %v670 = vmul.f32 %v666, 0.5
    %v671 = vmul.f32 %v668, 0.5
    %v672 = vtanh.pop %v670
    %v673 = vtanh.pop %v671
    %v674 = vadd.f32 %v672, 1.0
    %v675 = vadd.f32 %v673, 1.0
    %v676 = vmul.f32 %v670, %v674
    %v677 = vmul.f32 %v671, %v675
    %v678 = vld [vmem:[#allocation7] sm:$0xff]
    %v679 = vld [vmem:[#allocation7 + $0x8] sm:$0xff]
    %v680 = vld [vmem:[#allocation7 + $0x10] sm:$0xff]
    %v681 = vld [vmem:[#allocation7 + $0x18] sm:$0xff]
    %v682 = vld [vmem:[#allocation7 + $0x20] sm:$0xff]
    %v683 = vld [vmem:[#allocation7 + $0x28] sm:$0xff]
    %v684 = vld [vmem:[#allocation7 + $0x30] sm:$0xff]
    %v685 = vld [vmem:[#allocation7 + $0x38] sm:$0xff]
    %v686 = vld [vmem:[#allocation7 + $0x40] sm:$0xff]
    %v687 = vld [vmem:[#allocation7 + $0x48] sm:$0xff]
    %v688 = vld [vmem:[#allocation7 + $0x50] sm:$0xff]
    %v689 = vld [vmem:[#allocation7 + $0x58] sm:$0xff]
    %v690 = vld [vmem:[#allocation7 + $0x60] sm:$0xff]
    %v691 = vld [vmem:[#allocation7 + $0x68] sm:$0xff]
    %v692 = vld [vmem:[#allocation7 + $0x70] sm:$0xff]
    %v693 = vld [vmem:[#allocation7 + $0x78] sm:$0xff]
    %v694 = vld [vmem:[#allocation7 + $0x80] sm:$0xff]
    %v695 = vld [vmem:[#allocation7 + $0x88] sm:$0xff]
    %v696 = vld [vmem:[#allocation7 + $0x90] sm:$0xff]
    %v697 = vld [vmem:[#allocation7 + $0x98] sm:$0xff]
    %v698 = vld [vmem:[#allocation7 + $0xa0] sm:$0xff]
    %v699 = vld [vmem:[#allocation7 + $0xa8] sm:$0xff]
    %v700 = vld [vmem:[#allocation7 + $0xb0] sm:$0xff]
    %v701 = vld [vmem:[#allocation7 + $0xb8] sm:$0xff]
    %v702 = vld [vmem:[#allocation7 + $0xc0] sm:$0xff]
    %v703 = vld [vmem:[#allocation7 + $0xc8] sm:$0xff]
    %v704 = vld [vmem:[#allocation7 + $0xd0] sm:$0xff]
    %v705 = vld [vmem:[#allocation7 + $0xd8] sm:$0xff]
    %v706 = vld [vmem:[#allocation7 + $0xe0] sm:$0xff]
    %v707 = vld [vmem:[#allocation7 + $0xe8] sm:$0xff]
    %v708 = vld [vmem:[#allocation7 + $0xf0] sm:$0xff]
    %v709 = vld [vmem:[#allocation7 + $0xf8] sm:$0xff]
    %v710 = vld [vmem:[#allocation7 + $0x100] sm:$0xff]
    %v711 = vld [vmem:[#allocation7 + $0x108] sm:$0xff]
    %v712 = vld [vmem:[#allocation7 + $0x110] sm:$0xff]
    %v713 = vld [vmem:[#allocation7 + $0x118] sm:$0xff]
    %v714 = vld [vmem:[#allocation7 + $0x120] sm:$0xff]
    %v715 = vld [vmem:[#allocation7 + $0x128] sm:$0xff]
    %v716 = vld [vmem:[#allocation7 + $0x130] sm:$0xff]
    %v717 = vld [vmem:[#allocation7 + $0x138] sm:$0xff]
    %v718 = vld [vmem:[#allocation7 + $0x140] sm:$0xff]
    %v719 = vld [vmem:[#allocation7 + $0x148] sm:$0xff]
    %v720 = vld [vmem:[#allocation7 + $0x150] sm:$0xff]
    %v721 = vld [vmem:[#allocation7 + $0x158] sm:$0xff]
    %v722 = vld [vmem:[#allocation7 + $0x160] sm:$0xff]
    %v723 = vld [vmem:[#allocation7 + $0x168] sm:$0xff]
    %v724 = vld [vmem:[#allocation7 + $0x170] sm:$0xff]
    %v725 = vld [vmem:[#allocation7 + $0x178] sm:$0xff]
    %v726 = vld [vmem:[#allocation7 + $0x180] sm:$0xff]
    %v727 = vld [vmem:[#allocation7 + $0x188] sm:$0xff]
    %v728 = vld [vmem:[#allocation7 + $0x190] sm:$0xff]
    %v729 = vld [vmem:[#allocation7 + $0x198] sm:$0xff]
    %v730 = vld [vmem:[#allocation7 + $0x1a0] sm:$0xff]
    %v731 = vld [vmem:[#allocation7 + $0x1a8] sm:$0xff]
    %v732 = vld [vmem:[#allocation7 + $0x1b0] sm:$0xff]
    %v733 = vld [vmem:[#allocation7 + $0x1b8] sm:$0xff]
    %v734 = vld [vmem:[#allocation7 + $0x1c0] sm:$0xff]
    %v735 = vld [vmem:[#allocation7 + $0x1c8] sm:$0xff]
    %v736 = vld [vmem:[#allocation7 + $0x1d0] sm:$0xff]
    %v737 = vld [vmem:[#allocation7 + $0x1d8] sm:$0xff]
    %v738 = vld [vmem:[#allocation7 + $0x1e0] sm:$0xff]
    %v739 = vld [vmem:[#allocation7 + $0x1e8] sm:$0xff]
    %v740 = vld [vmem:[#allocation7 + $0x1f0] sm:$0xff]
    %v741 = vld [vmem:[#allocation7 + $0x1f8] sm:$0xff]
    %742 = vmatprep.subr.mxu0 %v709
    %743 = vmatpush1.msra.mxu0 %v708
    %744 = vmatprep.subr.mxu0 %v707
    %745 = vmatpush1.msra.mxu0 %v706
    %746 = vmatprep.subr.mxu0 %v705
    %747 = vmatpush1.msra.mxu0 %v704
    %748 = vmatprep.subr.mxu0 %v703
    %749 = vmatpush1.msra.mxu0 %v702
    %750 = vmatprep.subr.mxu0 %v701
    %751 = vmatpush1.msra.mxu0 %v700
    %752 = vmatprep.subr.mxu0 %v699
    %753 = vmatpush1.msra.mxu0 %v698
    %754 = vmatprep.subr.mxu0 %v697
    %755 = vmatpush1.msra.mxu0 %v696
    %756 = vmatprep.subr.mxu0 %v695
    %757 = vmatpush1.msra.mxu0 %v694
    %758 = vmatprep.subr.mxu0 %v693
    %759 = vmatpush1.msra.mxu0 %v692
    %760 = vmatprep.subr.mxu0 %v691
    %761 = vmatpush1.msra.mxu0 %v690
    %762 = vmatprep.subr.mxu0 %v689
    %763 = vmatpush1.msra.mxu0 %v688
    %764 = vmatprep.subr.mxu0 %v687
    %765 = vmatpush1.msra.mxu0 %v686
    %766 = vmatprep.subr.mxu0 %v685
    %767 = vmatpush1.msra.mxu0 %v684
    %768 = vmatprep.subr.mxu0 %v683
    %769 = vmatpush1.msra.mxu0 %v682
    %770 = vmatprep.subr.mxu0 %v681
    %771 = vmatpush1.msra.mxu0 %v680
    %772 = vmatprep.subr.mxu0 %v679
    %773 = vmatpush1.msra.mxu0 %v678
    %774 = vmatprep.subr.mxu0 %v741
    %775 = vmatpush2.msra.mxu0 %v740
    %776 = vmatprep.subr.mxu0 %v739
    %777 = vmatpush2.msra.mxu0 %v738
    %778 = vmatprep.subr.mxu0 %v737
    %779 = vmatpush2.msra.mxu0 %v736
    %780 = vmatprep.subr.mxu0 %v735
    %781 = vmatpush2.msra.mxu0 %v734
    %782 = vmatprep.subr.mxu0 %v733
    %783 = vmatpush2.msra.mxu0 %v732
    %784 = vmatprep.subr.mxu0 %v731
    %785 = vmatpush2.msra.mxu0 %v730
    %786 = vmatprep.subr.mxu0 %v729
    %787 = vmatpush2.msra.mxu0 %v728
    %788 = vmatprep.subr.mxu0 %v727
    %789 = vmatpush2.msra.mxu0 %v726
    %790 = vmatprep.subr.mxu0 %v725
    %791 = vmatpush2.msra.mxu0 %v724
    %792 = vmatprep.subr.mxu0 %v723
    %793 = vmatpush2.msra.mxu0 %v722
    %794 = vmatprep.subr.mxu0 %v721
    %795 = vmatpush2.msra.mxu0 %v720
    %796 = vmatprep.subr.mxu0 %v719
    %797 = vmatpush2.msra.mxu0 %v718
    %798 = vmatprep.subr.mxu0 %v717
    %799 = vmatpush2.msra.mxu0 %v716
    %800 = vmatprep.subr.mxu0 %v715
    %801 = vmatpush2.msra.mxu0 %v714
    %802 = vmatprep.subr.mxu0 %v713
    %803 = vmatpush2.msra.mxu0 %v712
    %804 = vmatprep.subr.mxu0 %v711
    %805 = vmatpush2.msra.mxu0 %v710
    %806 = vmatprep.mubr.f32.mxu0 %v677
    %807 = vmatmul.mubr.f32.gmra.mxu0 %v676
    %v808 = vpop.f32.mrf.mxu0
    %v809 = vadd.f32 0.0, %v808
    %v810 = vpop.f32.mrf.mxu0
    %v811 = vadd.f32 0.0, %v810
    %812 = vdwg.mxu0
    %v813 = vld [vmem:[%s7] sm:$0x1]
    %v814 = vlaneseq
    %v815 = vshrl.u32 %v814, 7
    %v816 = vsub.s32 0, %v815
    %v817 = vrot.slane %v813, %v816
    %v818 = vadd.f32 %v809, %v817
    %819 = vst [vmem:[%s8] sm:$0xff] %v818
    %v820 = vld [vmem:[%s7 + $0x1] sm:$0x1]
    %v821 = vlaneseq
    %v822 = vshrl.u32 %v821, 7
    %v823 = vsub.s32 0, %v822
    %v824 = vrot.slane %v820, %v823
    %v825 = vadd.f32 %v811, %v824
    %v826 = vld [vmem:[%s7 + $0x2] sm:$0x1]
    %v827 = vld [vmem:[%s7 + $0x3] sm:$0x1]
    %v828 = vlaneseq
    %v829 = vshrl.u32 %v828, 7
    %v830 = vsub.s32 0, %v829
    %v831 = vrot.slane %v826, %v830
    %v832 = vsub.f32 %v831, %v825
    %v833 = vmax.f32 %v832, 0.0
    %vm834 = vcmp.ne.f32.partialorder %v832, %v832
    %v835 = vadd.f32 %v832, 0.0
    %v836 = vand.u32 2147483647, %v832
    %v837 = vsub.f32 0.0, %v836
    %v838 = vmul.f32 %v837, 1.442695
    %v839 = vpow.pop %v838
    %v840 = vadd.f32 %v839, 1.0
    %v841 = vlog2.pop %v840
    %v842 = vmul.f32 %v841, 0.6931472
    %v843 = vmul.f32 -0.5, %v839
    %v844 = vadd.f32 %v843, 1.0
    %v845 = vmul.f32 %v844, %v839
    %v846 = vand.u32 2147483647, %v839
    %vm847 = vcmp.lt.f32.partialorder %v846, 0.0004427343
    %v848 = vsel %vm847, %v845, %v842
    %v849 = vadd.f32 %v833, %v848
    %v850 = vsel %vm834, %v835, %v849
    %v851 = vsub.f32 %v831, %v850
    %v852 = vlaneseq
    %v853 = vshrl.u32 %v852, 7
    %v854 = vsub.s32 0, %v853
    %v855 = vrot.slane %v827, %v854
    %v856 = vsub.f32 %v851, %v855
    %v857 = vmax.f32 %v856, 0.0
    %vm858 = vcmp.ne.f32.partialorder %v856, %v856
    %v859 = vadd.f32 %v856, 0.0
    %v860 = vand.u32 2147483647, %v856
    %v861 = vsub.f32 0.0, %v860
    %v862 = vmul.f32 %v861, 1.442695
    %v863 = vpow.pop %v862
    %v864 = vadd.f32 %v863, 1.0
    %v865 = vlog2.pop %v864
    %v866 = vmul.f32 %v865, 0.6931472
    %v867 = vmul.f32 -0.5, %v863
    %v868 = vadd.f32 %v867, 1.0
    %v869 = vmul.f32 %v868, %v863
    %v870 = vand.u32 2147483647, %v863
    %vm871 = vcmp.lt.f32.partialorder %v870, 0.0004427343
    %v872 = vsel %vm871, %v869, %v866
    %v873 = vadd.f32 %v857, %v872
    %v874 = vsel %vm858, %v859, %v873
    %v875 = vadd.f32 %v855, %v874
    %v876 = vmul.f32 %v875, 1.442695
    %v877 = vpow.pop %v876
    %878 = vst [vmem:[%s9] sm:$0xff] %v877
    // Predicated region
    $region50: #{_forward_impl.1} parent=1 // pred_check
      _
    $region51: #{_forward_impl.1} parent=1 // pred_check_branch
      %880 = sbr.rel (0) target = $region53
    $region52: #{_forward_impl.1} parent=1 // pred_region
      _
    $region53: #{_forward_impl.1} parent=1 // pred_fallthru
      _
    // Predicated region
    $region54: #{_forward_impl.1} parent=1 // pred_check
      _
    $region55: #{_forward_impl.1} parent=1 // pred_check_branch
      %882 = sbr.rel (0) target = $region57
    $region56: #{_forward_impl.1} parent=1 // pred_region
      _
    $region57: #{_forward_impl.1} parent=1 // pred_fallthru
      _
    // Predicated region
    $region58: #{_forward_impl.1} parent=1 // pred_check
      _
    $region59: #{_forward_impl.1} parent=1 // pred_check_branch
      %884 = sbr.rel (0) target = $region61
    $region60: #{_forward_impl.1} parent=1 // pred_region
      _
    $region61: #{_forward_impl.1} parent=1 // pred_fallthru
      _
    // Predicated region
    $region62: #{_forward_impl.1} parent=1 // pred_check
      _
    $region63: #{_forward_impl.1} parent=1 // pred_check_branch
      %886 = sbr.rel (0) target = $region65
    $region64: #{_forward_impl.1} parent=1 // pred_region
      _
    $region65: #{_forward_impl.1} parent=1 // pred_fallthru
      _
    %887 = vsyncpa [#allocation3], 1
    %888 = vsyncpa [#allocation5], 1
    %889 = vsyncpa [#allocation8], 1

</llo_original>
